<compile_context>
chip_gen: v7x
topology: tpu7x:2x2x1
jax: 0.10.0
libtpu: 0.0.40
codegen_flags: <defaults>
</compile_context>

<pallas_src>
import math
import numpy as np
import jax
import jax.numpy as jnp
from jax.experimental import pallas as pl
from jax.experimental.pallas import tpu as pltpu


def _round_up(x, n):
    return ((x + n - 1) // n) * n


# ----------------------------------------------------------------------------
# Deterministic constant buffers (glue, plain numpy)
# ----------------------------------------------------------------------------
def _legpoly_schmidt_inverse(mmax, lmax, theta, csphase=True):
    """Schmidt-style associated Legendre functions ('inverse' scaling,
    following torch-harmonics conventions) at colatitudes theta.
    Returns array of shape (mmax, lmax, nlat)."""
    x = np.cos(theta)
    nmax = max(mmax, lmax)
    vdm = np.zeros((nmax, nmax, len(x)), dtype=np.float64)
    norm_factor = 1.0 / math.sqrt(4.0 * math.pi)      # schmidt + inverse
    vdm[0, 0, :] = norm_factor / math.sqrt(4.0 * math.pi)
    for l in range(1, nmax):
        vdm[l - 1, l, :] = math.sqrt(2 * l + 1) * x * vdm[l - 1, l - 1, :]
        vdm[l, l, :] = np.sqrt((2 * l + 1) * (1 + x) * (1 - x) / (2 * l)) * vdm[l - 1, l - 1, :]
    for l in range(2, nmax):
        for m in range(0, l - 1):
            a = math.sqrt((2 * l - 1) / (l - m) * (2 * l + 1) / (l + m))
            b = math.sqrt((l + m - 1) / (l - m) * (2 * l + 1) / (2 * l - 3) * (l - m - 1) / (l + m))
            vdm[m, l, :] = x * a * vdm[m, l - 1, :] - b * vdm[m, l - 2, :]
    for l in range(nmax):                              # Schmidt, inverse dir.
        vdm[:, l, :] *= math.sqrt(2 * l + 1)
    vdm = vdm[:mmax, :lmax]
    if csphase:
        for m in range(1, mmax, 2):
            vdm[m] *= -1.0
    return vdm


def _irfft_matrices(mmax, nlon):
    """Real matrices implementing torch.fft.irfft(x, n=nlon, norm='forward')
    as out = Re(x) @ cc + Im(x) @ cs."""
    m = np.arange(mmax)[:, None]
    n = np.arange(nlon)[None, :]
    ang = 2.0 * np.pi * m * n / nlon
    scale = np.full((mmax, 1), 2.0)
    scale[0, 0] = 1.0
    if nlon % 2 == 0 and mmax - 1 == nlon // 2:
        scale[-1, 0] = 1.0
    cc = scale * np.cos(ang)        # multiplies Re(coeff)
    cs = -scale * np.sin(ang)       # multiplies Im(coeff)
    return cc, cs


def _split_bf16(x):
    """Pre-split an f32 array into bf16 (hi, lo) so the kernels run pure bf16
    MXU passes with no in-kernel casts/subtracts (review: pre-split operands)."""
    x = x.astype(jnp.float32)
    hi = x.astype(jnp.bfloat16)
    lo = (x - hi.astype(jnp.float32)).astype(jnp.bfloat16)
    return hi, lo


def _vmem_budget_bytes():
    """Per-generation VMEM budget: ~48 MiB on v7x (64 MiB physical),
    ~96 MiB on v5e/v6e (128 MiB physical)."""
    cap = 64 * 1024 * 1024
    try:
        info = pltpu.get_tpu_info()
        cap_q = getattr(info, "vmem_capacity_bytes", None)
        if cap_q:
            cap = int(cap_q)
    except Exception:
        pass
    budget = cap * 3 // 4
    return max(32 * 1024 * 1024, min(budget, 112 * 1024 * 1024))


# ----------------------------------------------------------------------------
# Kernel 1: de-zeroed Legendre synthesis (batched over order m, contract over l)
# ----------------------------------------------------------------------------
def _legendre_kernel(xh_ref, xl_ref, ph_ref, plo_ref, y_ref):
    # y[c, p, k] = sum_l x[c, p, l] * P[c, l, k]; c = order m within the chunk,
    # p = stacked [Re; Im] x (batch*channel) rows, k = latitude.
    # bf16x3: operands arrive pre-split, 3 native bf16 MXU passes, f32 accum.
    def bmm(a, b):
        return jnp.einsum('cpl,clk->cpk', a, b,
                          preferred_element_type=jnp.float32)
    xh, xl = xh_ref[...], xl_ref[...]
    ph, plo = ph_ref[...], plo_ref[...]
    y_ref[...] = bmm(xh, ph) + bmm(xl, ph) + bmm(xh, plo)


def legendre_synthesis_pallas(xh, xl, ph, plo, *, mc, vmem_limit):
    mp_, pb, lp = xh.shape
    nlat = ph.shape[2]
    grid = (mp_ // mc,)

    flops = 3 * 2 * mp_ * pb * lp * nlat
    bytes_accessed = 2 * (2 * xh.size + 2 * ph.size) + 4 * mp_ * pb * nlat

    return pl.pallas_call(
        _legendre_kernel,
        out_shape=jax.ShapeDtypeStruct((mp_, pb, nlat), jnp.float32),
        grid=grid,
        in_specs=[
            pl.BlockSpec((mc, pb, lp), lambda i: (i, 0, 0)),     # coeffs hi
            pl.BlockSpec((mc, pb, lp), lambda i: (i, 0, 0)),     # coeffs lo
            pl.BlockSpec((mc, lp, nlat), lambda i: (i, 0, 0)),   # Legendre hi
            pl.BlockSpec((mc, lp, nlat), lambda i: (i, 0, 0)),   # Legendre lo
        ],
        out_specs=pl.BlockSpec((mc, pb, nlat), lambda i: (i, 0, 0)),
        compiler_params=pltpu.CompilerParams(
            dimension_semantics=("parallel",),
            vmem_limit_bytes=vmem_limit,
        ),
        cost_estimate=pl.CostEstimate(
            flops=flops, transcendentals=0, bytes_accessed=bytes_accessed),
    )(xh, xl, ph, plo)


# ----------------------------------------------------------------------------
# Kernel 2: inverse real FFT over longitude (dense matmul, lane-dense output)
# ----------------------------------------------------------------------------
def _ifft_kernel(ah_ref, al_ref, wh_ref, wl_ref, o_ref):
    # o[r, n] = sum_q a[r, q] * w[q, n]; q runs over stacked (Re, Im) x order m,
    # rows r are (batch*channel, latitude) ordered, n is (lane-padded) longitude.
    def mm(a, b):
        return jnp.dot(a, b, preferred_element_type=jnp.float32)
    ah, al = ah_ref[...], al_ref[...]
    wh, wl = wh_ref[...], wl_ref[...]
    o_ref[...] = mm(ah, wh) + mm(al, wh) + mm(ah, wl)


def inverse_fft_pallas(ah, al, wh, wl, *, rt, vmem_limit):
    rp, kd = ah.shape
    nlonp = wh.shape[1]
    grid = (rp // rt,)

    flops = 3 * 2 * rp * kd * nlonp
    bytes_accessed = 2 * (2 * ah.size + 2 * wh.size) + 4 * rp * nlonp

    return pl.pallas_call(
        _ifft_kernel,
        out_shape=jax.ShapeDtypeStruct((rp, nlonp), jnp.float32),
        grid=grid,
        in_specs=[
            pl.BlockSpec((rt, kd), lambda i: (i, 0)),        # [Yr|Yi] rows hi
            pl.BlockSpec((rt, kd), lambda i: (i, 0)),        # [Yr|Yi] rows lo
            pl.BlockSpec((kd, nlonp), lambda i: (0, 0)),     # [cc;cs] hi, resident
            pl.BlockSpec((kd, nlonp), lambda i: (0, 0)),     # [cc;cs] lo, resident
        ],
        out_specs=pl.BlockSpec((rt, nlonp), lambda i: (i, 0)),
        compiler_params=pltpu.CompilerParams(
            dimension_semantics=("parallel",),
            vmem_limit_bytes=vmem_limit,
        ),
        cost_estimate=pl.CostEstimate(
            flops=flops, transcendentals=0, bytes_accessed=bytes_accessed),
    )(ah, al, wh, wl)


# ----------------------------------------------------------------------------
# SpectralModel equivalent
# ----------------------------------------------------------------------------
class SpectralModelPallas:
    def __init__(self, n_modes, n_theta, n_lambda, batch=1, channels=3, key=None):
        self.lmax, self.mmax = n_modes, n_modes + 1
        self.nlat, self.nlon = n_theta, n_lambda
        self.batch, self.channels = batch, channels

        theta = np.pi * (np.arange(n_theta) + 0.5) / n_theta   # equiangular colat.
        pct = _legpoly_schmidt_inverse(self.mmax, self.lmax, theta)  # (mmax,lmax,nlat)
        cc, cs = _irfft_matrices(self.mmax, self.nlon)               # (mmax,nlon)
        self.pct = jnp.asarray(pct, jnp.float32)   # for the pure-JAX reference

        # ---- padded / tiled layout ------------------------------------------
        bc = batch * channels
        self.bc = bc
        self.bcp = _round_up(bc, 8)              # sublane-pad batch*channels
        self.pb = 2 * self.bcp                   # stacked [Re; Im] rows
        self.lp = _round_up(self.lmax, 16)       # padded degree (contraction) axis
        self.mpad = _round_up(self.mmax, 8)      # padded order axis
        self.nlonp = _round_up(self.nlon, 128)   # lane-dense output columns

        self.vmem_limit = _vmem_budget_bytes()   # per-generation VMEM budget

        # m-chunk for kernel 1: keep >= 2 grid steps (v7x megacore) and keep the
        # streamed Legendre blocks well inside the VMEM budget (double-buffered).
        def _k1_step_bytes(c):
            return (2 * 2 * 2 * c * self.pb * self.lp        # x hi+lo bf16, dbl buf
                    + 2 * 2 * 2 * c * self.lp * self.nlat    # pct hi+lo bf16, dbl buf
                    + 2 * 4 * c * self.pb * self.nlat)       # out f32, dbl buf
        mc = min(8, self.mpad)
        while (self.mpad % (mc * 2) == 0 and self.mpad // (mc * 2) >= 2
               and _k1_step_bytes(mc * 2) <= self.vmem_limit // 2):
            mc *= 2
        self.mc = mc

        # Row tiling for kernel 2 (rows = (batch*channel, latitude) ordered).
        self.rows = bc * self.nlat
        self.rp = _round_up(self.rows, 8)
        self.rt = self._pick_row_tile(self.rp)

        # ---- constant operators, pre-split to bf16 hi/lo ----------------------
        # Stage-1 operator, DE-ZEROED: only the true (mmax, lmax, nlat) entries
        # are nonzero (no block-diagonal embedding over m).
        p3 = np.zeros((self.mpad, self.lp, self.nlat), dtype=np.float64)
        p3[:self.mmax, :self.lmax, :] = pct
        self.p3_hi, self.p3_lo = _split_bf16(jnp.asarray(p3, jnp.float32))

        # Stage-2 operator [cc ; cs], lane-padded longitude; padded m rows and
        # padded nlon columns stay zero (kept in sync with the zero-padded
        # coefficient lanes -> padded contributions are exactly zero).
        w = np.zeros((2 * self.mpad, self.nlonp), dtype=np.float64)
        w[:self.mmax, :self.nlon] = cc
        w[self.mpad:self.mpad + self.mmax, :self.nlon] = cs
        self.w_hi, self.w_lo = _split_bf16(jnp.asarray(w, jnp.float32))

        # Deterministic synthetic init of the nn.Parameter `coeffs`.
        key = jax.random.PRNGKey(0) if key is None else key
        kr, ki = jax.random.split(key)
        shape = (batch, channels, self.lmax, self.mmax)
        cr = jax.random.normal(kr, shape, jnp.float32)
        ci = jax.random.normal(ki, shape, jnp.float32)
        ci = ci.at[..., 0].set(0.0)   # m=0 coeffs of a real field are real
        self.coeffs_real, self.coeffs_imag = cr, ci

    def _pick_row_tile(self, rp):
        """Largest row tile (multiple of 8) dividing rp that keeps >= 2 grid
        tiles (v7x megacore) and fits the per-generation VMEM budget."""
        budget = self.vmem_limit // 2
        best = min(8, rp)
        for cand in range(8, min(rp, 4096) + 1, 8):
            if rp % cand:
                continue
            per_step = 2 * (cand * self.nlonp * 4            # f32 output block
                            + 2 * cand * 2 * self.mpad * 2)  # bf16 hi/lo lhs blocks
            if per_step > budget:
                continue
            if rp // cand >= 2:
                best = cand
        return best

    def forward(self):
        b, c = self.batch, self.channels
        bc, bcp = self.bc, self.bcp

        # ---- pack coefficients into the m-batched layout (mpad, 2*bcp, lp) ----
        xr = jnp.transpose(self.coeffs_real.reshape(bc, self.lmax, self.mmax), (2, 0, 1))
        xi = jnp.transpose(self.coeffs_imag.reshape(bc, self.lmax, self.mmax), (2, 0, 1))
        x3 = jnp.zeros((self.mpad, self.pb, self.lp), jnp.float32)
        x3 = x3.at[:self.mmax, :bc, :self.lmax].set(xr)
        x3 = x3.at[:self.mmax, bcp:bcp + bc, :self.lmax].set(xi)
        x3_hi, x3_lo = _split_bf16(x3)

        # ---- stage 1: de-zeroed Legendre synthesis (Pallas, batched over m) ---
        y3 = legendre_synthesis_pallas(x3_hi, x3_lo, self.p3_hi, self.p3_lo,
                                       mc=self.mc, vmem_limit=self.vmem_limit)
        # y3[m, p, k]: p < bcp -> Re, p >= bcp -> Im, k = latitude.

        # ---- relayout the SMALL intermediate (XLA glue on ~bc*nlat*mmax f32) --
        # This replaces the lane-sparse in-kernel sub-tile copies; the array is
        # tiny compared to the streamed Legendre operand, so the extra HBM round
        # trip is negligible.
        yr = jnp.transpose(y3[:, :bc, :], (1, 2, 0))            # (bc, nlat, mpad)
        yi = jnp.transpose(y3[:, bcp:bcp + bc, :], (1, 2, 0))   # (bc, nlat, mpad)
        ri = jnp.concatenate([yr, yi], axis=-1).reshape(bc * self.nlat, 2 * self.mpad)
        if self.rp != bc * self.nlat:
            ri = jnp.pad(ri, ((0, self.rp - bc * self.nlat), (0, 0)))
        ri_hi, ri_lo = _split_bf16(ri)

        # ---- stage 2: inverse real FFT (Pallas, lane-dense output stores) -----
        out2d = inverse_fft_pallas(ri_hi, ri_lo, self.w_hi, self.w_lo,
                                   rt=self.rt, vmem_limit=self.vmem_limit)

        # Rows already (batch*channel, latitude) ordered -> plain slice+reshape,
        # NO full-output transpose.
        out = out2d[:bc * self.nlat, :self.nlon]
        return out.reshape(b, c, self.nlat, self.nlon)

    def forward_reference(self):
        """Pure-JAX reference mirroring torch-harmonics InverseRealSHT."""
        hi = jax.lax.Precision.HIGHEST
        rl = jnp.einsum('...lm,mlk->...km', self.coeffs_real, self.pct, precision=hi)
        im = jnp.einsum('...lm,mlk->...km', self.coeffs_imag, self.pct, precision=hi)
        x = rl + 1j * im                                   # (B, C, nlat, mmax)
        pad = self.nlon // 2 + 1 - self.mmax
        if pad > 0:
            x = jnp.pad(x, ((0, 0), (0, 0), (0, 0), (0, pad)))
        return jnp.fft.irfft(x, n=self.nlon, axis=-1, norm="forward")


if __name__ == "__main__":
    n_modes, n_theta, n_lambda = 8, 16, 32     # small: lmax=8, mmax=9, grid 16x32
    model = SpectralModelPallas(n_modes, n_theta, n_lambda, batch=1, channels=3)

    out = model.forward()
    jax.block_until_ready(out)

    ref = model.forward_reference()
    jax.block_until_ready(ref)

    assert out.shape == (1, 3, n_theta, n_lambda), out.shape
    np.testing.assert_allclose(np.asarray(out), np.asarray(ref), rtol=1e-3, atol=1e-3)
    print("KERNEL_OK")
</pallas_src>

<mosaic_0001>
module attributes {stable_mosaic.version = 11 : i64} {
  func.func @_legendre_kernel(%arg0: i32, %arg1: memref<8x16x16xbf16, #tpu.memory_space<vmem>>, %arg2: memref<8x16x16xbf16, #tpu.memory_space<vmem>>, %arg3: memref<8x16x16xbf16, #tpu.memory_space<vmem>>, %arg4: memref<8x16x16xbf16, #tpu.memory_space<vmem>>, %arg5: memref<8x16x16xf32, #tpu.memory_space<vmem>>) attributes {dimension_semantics = [#tpu.dimension_semantics<parallel>], iteration_bounds = array<i64: 2>, scalar_prefetch = 0 : i64, scratch_operands = 0 : i64, tpu.core_type = #tpu.core_type<tc>, window_params = [{transform_indices = @transform_0, window_bounds = array<i64: 8, 16, 16>}, {transform_indices = @transform_1, window_bounds = array<i64: 8, 16, 16>}, {transform_indices = @transform_2, window_bounds = array<i64: 8, 16, 16>}, {transform_indices = @transform_3, window_bounds = array<i64: 8, 16, 16>}, {transform_indices = @transform_4, window_bounds = array<i64: 8, 16, 16>}]} {
    %c0 = arith.constant 0 : index
    %c0_0 = arith.constant 0 : index
    %c0_1 = arith.constant 0 : index
    %0 = vector.load %arg1[%c0, %c0_0, %c0_1] : memref<8x16x16xbf16, #tpu.memory_space<vmem>>, vector<8x16x16xbf16>
    %c0_2 = arith.constant 0 : index
    %c0_3 = arith.constant 0 : index
    %c0_4 = arith.constant 0 : index
    %1 = vector.load %arg2[%c0_2, %c0_3, %c0_4] : memref<8x16x16xbf16, #tpu.memory_space<vmem>>, vector<8x16x16xbf16>
    %c0_5 = arith.constant 0 : index
    %c0_6 = arith.constant 0 : index
    %c0_7 = arith.constant 0 : index
    %2 = vector.load %arg3[%c0_5, %c0_6, %c0_7] : memref<8x16x16xbf16, #tpu.memory_space<vmem>>, vector<8x16x16xbf16>
    %c0_8 = arith.constant 0 : index
    %c0_9 = arith.constant 0 : index
    %c0_10 = arith.constant 0 : index
    %3 = vector.load %arg4[%c0_8, %c0_9, %c0_10] : memref<8x16x16xbf16, #tpu.memory_space<vmem>>, vector<8x16x16xbf16>
    "tpu.trace_start"() <{level = 10 : i32, message = "cpl,clk->cpk"}> : () -> ()
    %cst = arith.constant dense<0.000000e+00> : vector<8x16x16xf32>
    %4 = tpu.matmul %0, %2, %cst {dimension_numbers = #tpu.dot_dimension_numbers<[2], [1], [1], [2], [0, 0, 0, 1, 1, 2], [0], [0]>} : vector<8x16x16xbf16>, vector<8x16x16xbf16>, vector<8x16x16xf32> -> vector<8x16x16xf32>
    %cst_11 = arith.constant dense<0.000000e+00> : vector<8x16x16xf32>
    %5 = tpu.matmul %1, %2, %cst_11 {dimension_numbers = #tpu.dot_dimension_numbers<[2], [1], [1], [2], [0, 0, 0, 1, 1, 2], [0], [0]>} : vector<8x16x16xbf16>, vector<8x16x16xbf16>, vector<8x16x16xf32> -> vector<8x16x16xf32>
    "tpu.trace_stop"() : () -> ()
    %6 = arith.addf %4, %5 : vector<8x16x16xf32>
    "tpu.trace_start"() <{level = 10 : i32, message = "cpl,clk->cpk"}> : () -> ()
    %cst_12 = arith.constant dense<0.000000e+00> : vector<8x16x16xf32>
    %7 = tpu.matmul %0, %3, %cst_12 {dimension_numbers = #tpu.dot_dimension_numbers<[2], [1], [1], [2], [0, 0, 0, 1, 1, 2], [0], [0]>} : vector<8x16x16xbf16>, vector<8x16x16xbf16>, vector<8x16x16xf32> -> vector<8x16x16xf32>
    "tpu.trace_stop"() : () -> ()
    %8 = arith.addf %6, %7 : vector<8x16x16xf32>
    %c0_13 = arith.constant 0 : index
    %c0_14 = arith.constant 0 : index
    %c0_15 = arith.constant 0 : index
    %9 = vector.load %arg5[%c0_13, %c0_14, %c0_15] : memref<8x16x16xf32, #tpu.memory_space<vmem>>, vector<8x16x16xf32>
    tpu.vector_store %arg5[%c0_13, %c0_14, %c0_15], %8 {strides = array<i32>} : memref<8x16x16xf32, #tpu.memory_space<vmem>>, vector<8x16x16xf32>,
    return
  }
  func.func @transform_0(%arg0: i32) -> (i32, i32, i32) {
    %c0_i32 = arith.constant 0 : i32
    %c0_i32_0 = arith.constant 0 : i32
    %c0_i32_1 = arith.constant 0 : i32
    return %arg0, %c0_i32, %c0_i32_0 : i32, i32, i32
  }
  func.func @transform_1(%arg0: i32) -> (i32, i32, i32) {
    %c0_i32 = arith.constant 0 : i32
    %c0_i32_0 = arith.constant 0 : i32
    %c0_i32_1 = arith.constant 0 : i32
    return %arg0, %c0_i32, %c0_i32_0 : i32, i32, i32
  }
  func.func @transform_2(%arg0: i32) -> (i32, i32, i32) {
    %c0_i32 = arith.constant 0 : i32
    %c0_i32_0 = arith.constant 0 : i32
    %c0_i32_1 = arith.constant 0 : i32
    return %arg0, %c0_i32, %c0_i32_0 : i32, i32, i32
  }
  func.func @transform_3(%arg0: i32) -> (i32, i32, i32) {
    %c0_i32 = arith.constant 0 : i32
    %c0_i32_0 = arith.constant 0 : i32
    %c0_i32_1 = arith.constant 0 : i32
    return %arg0, %c0_i32, %c0_i32_0 : i32, i32, i32
  }
  func.func @transform_4(%arg0: i32) -> (i32, i32, i32) {
    %c0_i32 = arith.constant 0 : i32
    %c0_i32_0 = arith.constant 0 : i32
    %c0_i32_1 = arith.constant 0 : i32
    return %arg0, %c0_i32, %c0_i32_0 : i32, i32, i32
  }
}

</mosaic_0001>

<llo_original>
// kernel: tpu_custom_call.1
$region0: #{tpu_custom_call.1}
  #allocation0 [shape = 'u32[]', space=smem, size = 0x4, offset = 0x4, fixed_abs, tag = 'smem constant byte address 0x4 - core index']
  #allocation1 [shape = 'u32[144,128]{1,0:T(1,128)}', space=vmem, size = 0x12000, scoped, tag = 'internal scratch']
  %s0 = inlined_call_operand.hbm [shape: bf16[16,16,16], index: 0, kind: input, shape index: {}]
  %s1 = inlined_call_operand.hbm [shape: bf16[16,16,16], index: 1, kind: input, shape index: {}]
  %s2 = inlined_call_operand.hbm [shape: bf16[16,16,16], index: 2, kind: input, shape index: {}]
  %s3 = inlined_call_operand.hbm [shape: bf16[16,16,16], index: 3, kind: input, shape index: {}]
  %s4 = inlined_call_operand.hbm [shape: f32[16,16,16], index: 4, kind: output, shape index: {}]
  %s5 = sld [smem:[#allocation0]]
  $region65: #{tpu_custom_call.1} parent=0
    _
  %s7 = ssub.s32 1, %s5
  %s8 = scalar_select 0, %s7, %s5
  $region1: #{tpu_custom_call.1} parent=0
    #allocation2 [shape = 'u8[65536]{0}', space=vmem, size = 0x10000, scoped, tag = 'input window, operand 0']
    #allocation3 [shape = 's32[2]{0}', space=sflag, size = 0x8, scoped, tag = 'scoped memory for tpu_custom_call.1']
    #allocation4 [shape = 's32[2]{0}', space=sflag, size = 0x8, scoped, tag = 'scoped memory for tpu_custom_call.1']
    #allocation5 [shape = 'u8[65536]{0}', space=vmem, size = 0x10000, scoped, tag = 'input window, operand 1']
    #allocation6 [shape = 's32[2]{0}', space=sflag, size = 0x8, scoped, tag = 'scoped memory for tpu_custom_call.1']
    #allocation7 [shape = 'u8[65536]{0}', space=vmem, size = 0x10000, scoped, tag = 'input window, operand 2']
    #allocation8 [shape = 'u8[65536]{0}', space=vmem, size = 0x10000, scoped, tag = 'input window, operand 3']
    #allocation9 [shape = 's32[2]{0}', space=sflag, size = 0x8, scoped, tag = 'scoped memory for tpu_custom_call.1']
    #allocation10 [shape = 'u8[131072]{0}', space=vmem, size = 0x20000, scoped, tag = 'output window, operand 0']
    %9 = vsyncpa [#allocation3], 0
    %s10 = scalar_lea.sflag [#allocation3], 1
    %11 = vsyncpa %s10, 0
    %12 = vsyncpa [#allocation6], 0
    %s13 = scalar_lea.sflag [#allocation6], 1
    %14 = vsyncpa %s13, 0
    %15 = vsyncpa [#allocation9], 0
    %s16 = scalar_lea.sflag [#allocation9], 1
    %17 = vsyncpa %s16, 0
    %18 = vsyncpa [#allocation4], 0
    %s19 = scalar_lea.sflag [#allocation4], 1
    %20 = vsyncpa %s19, 0
    loop: start=0, step=1, limit=4
    $region2: #{tpu_custom_call.1} parent=1 // loop_pre_header
      _
    $region3: #{tpu_custom_call.1} parent=1 // loop_header
      %s22 = sphi 0, %s26
      %p23 = scmp.ge.s32.totalorder %s22, 4
      %s32 = sphi 0, %s34
      %s35 = sphi 0, %s32
      %s36 = sphi 0, %s35
      %s52 = sphi 0, %s36
      %s58 = sphi 0, %s60
      %s61 = sphi 0, %s58
      %s62 = sphi 0, %s61
      %s78 = sphi 0, %s62
      %s84 = sphi 0, %s86
      %s87 = sphi 0, %s84
      %s88 = sphi 0, %s87
      %s104 = sphi 0, %s88
      %s110 = sphi 0, %s112
      %s113 = sphi 0, %s110
      %s114 = sphi 0, %s113
      %s130 = sphi 0, %s114
      %s136 = sphi 0, %s138
      %s139 = sphi 0, %s136
      %s140 = sphi 0, %s139
      %s156 = sphi 0, %s140
    $region4: #{tpu_custom_call.1} parent=1 // loop_header_branch
      %25 = sbr.rel (%p23) target = $region8
    $region5: #{tpu_custom_call.1} parent=1 // loop_body
      %s27 = ssub.s32 %s22, 1
      %s28 = ssub.s32 %s22, 2
      %s29 = sadd.s32 %s22, 1
      %s30 = ssub.s32 %s22, %s29
      %p31 = scmp.eq.s32.totalorder %s30, 0
      %s33 = sadd.s32 %s32, 1
      %s34 = scalar_select %p31, %s32, %s33
      %p37 = pneg %p31
      %p38 = scmp.eq.s32.totalorder %s22, 1
      %p39 = por %p37, %p38
      %p40 = scmp.ne.s32.totalorder %s32, %s35
      %p41 = scmp.eq.s32.totalorder %s22, 0
      %p42 = por %p40, %p41
      %p43 = scmp.ne.s32.totalorder %s32, %s35
      %p44 = scmp.eq.s32.totalorder %s27, 1
      %p45 = por %p43, %p44
      %p46 = scmp.ne.s32.totalorder %s35, %s36
      %p47 = scmp.eq.s32.totalorder %s27, 0
      %p48 = por %p46, %p47
      %p49 = scmp.ne.s32.totalorder %s35, %s36
      %p50 = scmp.eq.s32.totalorder %s28, 1
      %p51 = por %p49, %p50
      %p53 = scmp.ne.s32.totalorder %s36, %s52
      %p54 = scmp.eq.s32.totalorder %s28, 0
      %p55 = por %p53, %p54
      %s56 = ssub.s32 %s22, %s29
      %p57 = scmp.eq.s32.totalorder %s56, 0
      %s59 = sadd.s32 %s58, 1
      %s60 = scalar_select %p57, %s58, %s59
      %p63 = pneg %p57
      %p64 = scmp.eq.s32.totalorder %s22, 1
      %p65 = por %p63, %p64
      %p66 = scmp.ne.s32.totalorder %s58, %s61
      %p67 = scmp.eq.s32.totalorder %s22, 0
      %p68 = por %p66, %p67
      %p69 = scmp.ne.s32.totalorder %s58, %s61
      %p70 = scmp.eq.s32.totalorder %s27, 1
      %p71 = por %p69, %p70
      %p72 = scmp.ne.s32.totalorder %s61, %s62
      %p73 = scmp.eq.s32.totalorder %s27, 0
      %p74 = por %p72, %p73
      %p75 = scmp.ne.s32.totalorder %s61, %s62
      %p76 = scmp.eq.s32.totalorder %s28, 1
      %p77 = por %p75, %p76
      %p79 = scmp.ne.s32.totalorder %s62, %s78
      %p80 = scmp.eq.s32.totalorder %s28, 0
      %p81 = por %p79, %p80
      %s82 = ssub.s32 %s22, %s29
      %p83 = scmp.eq.s32.totalorder %s82, 0
      %s85 = sadd.s32 %s84, 1
      %s86 = scalar_select %p83, %s84, %s85
      %p89 = pneg %p83
      %p90 = scmp.eq.s32.totalorder %s22, 1
      %p91 = por %p89, %p90
      %p92 = scmp.ne.s32.totalorder %s84, %s87
      %p93 = scmp.eq.s32.totalorder %s22, 0
      %p94 = por %p92, %p93
      %p95 = scmp.ne.s32.totalorder %s84, %s87
      %p96 = scmp.eq.s32.totalorder %s27, 1
      %p97 = por %p95, %p96
      %p98 = scmp.ne.s32.totalorder %s87, %s88
      %p99 = scmp.eq.s32.totalorder %s27, 0
      %p100 = por %p98, %p99
      %p101 = scmp.ne.s32.totalorder %s87, %s88
      %p102 = scmp.eq.s32.totalorder %s28, 1
      %p103 = por %p101, %p102
      %p105 = scmp.ne.s32.totalorder %s88, %s104
      %p106 = scmp.eq.s32.totalorder %s28, 0
      %p107 = por %p105, %p106
      %s108 = ssub.s32 %s22, %s29
      %p109 = scmp.eq.s32.totalorder %s108, 0
      %s111 = sadd.s32 %s110, 1
      %s112 = scalar_select %p109, %s110, %s111
      %p115 = pneg %p109
      %p116 = scmp.eq.s32.totalorder %s22, 1
      %p117 = por %p115, %p116
      %p118 = scmp.ne.s32.totalorder %s110, %s113
      %p119 = scmp.eq.s32.totalorder %s22, 0
      %p120 = por %p118, %p119
      %p121 = scmp.ne.s32.totalorder %s110, %s113
      %p122 = scmp.eq.s32.totalorder %s27, 1
      %p123 = por %p121, %p122
      %p124 = scmp.ne.s32.totalorder %s113, %s114
      %p125 = scmp.eq.s32.totalorder %s27, 0
      %p126 = por %p124, %p125
      %p127 = scmp.ne.s32.totalorder %s113, %s114
      %p128 = scmp.eq.s32.totalorder %s28, 1
      %p129 = por %p127, %p128
      %p131 = scmp.ne.s32.totalorder %s114, %s130
      %p132 = scmp.eq.s32.totalorder %s28, 0
      %p133 = por %p131, %p132
      %s134 = ssub.s32 %s22, %s29
      %p135 = scmp.eq.s32.totalorder %s134, 0
      %s137 = sadd.s32 %s136, 1
      %s138 = scalar_select %p135, %s136, %s137
      %p141 = pneg %p135
      %p142 = scmp.eq.s32.totalorder %s22, 1
      %p143 = por %p141, %p142
      %p144 = scmp.ne.s32.totalorder %s136, %s139
      %p145 = scmp.eq.s32.totalorder %s22, 0
      %p146 = por %p144, %p145
      %p147 = scmp.ne.s32.totalorder %s136, %s139
      %p148 = scmp.eq.s32.totalorder %s27, 1
      %p149 = por %p147, %p148
      %p150 = scmp.ne.s32.totalorder %s139, %s140
      %p151 = scmp.eq.s32.totalorder %s27, 0
      %p152 = por %p150, %p151
      %p153 = scmp.ne.s32.totalorder %s139, %s140
      %p154 = scmp.eq.s32.totalorder %s28, 1
      %p155 = por %p153, %p154
      %p157 = scmp.ne.s32.totalorder %s140, %s156
      %p158 = scmp.eq.s32.totalorder %s28, 0
      %p159 = por %p157, %p158
      %p160 = scmp.le.s32.totalorder 1, %s22
      %p161 = scmp.lt.s32.totalorder %s22, 3
      %p162 = pnand %p160, %p161
      %p163 = pneg %p162
      // Predicated region
      $region9: #{tpu_custom_call.1} parent=5 // pred_check
        _
      $region10: #{tpu_custom_call.1} parent=5 // pred_check_branch
        %165 = sbr.rel (%p162) target = $region12
      $region11: #{tpu_custom_call.1} parent=5 // pred_region
        %s166 = ssub.s32 %s22, 1
      $region12: #{tpu_custom_call.1} parent=5 // pred_fallthru
        _
      %p167 = scmp.lt.s32.totalorder %s22, 2
      // Predicated region
      $region13: #{tpu_custom_call.1} parent=5 // pred_check
        %p168 = pneg %p167
      $region14: #{tpu_custom_call.1} parent=5 // pred_check_branch
        %170 = sbr.rel (%p168) target = $region16
      $region15: #{tpu_custom_call.1} parent=5 // pred_region
        // Predicated region
        $region17: #{tpu_custom_call.1} parent=15 // pred_check
          %p171 = pneg %p42
        $region18: #{tpu_custom_call.1} parent=15 // pred_check_branch
          %173 = sbr.rel (%p171) target = $region20
        $region19: #{tpu_custom_call.1} parent=15 // pred_region
          %s174 = sand.u32 %s32, 1
          %s175 = scalar_lea.sflag [#allocation3], %s174
          %s176 = sand.u32 %s32, 1
          %s177 = smul.addr %s176, 64
          %s178 = scalar_lea.vmem [#allocation2], %s177
          %s179 = smul.u32 8, %s22
          %s181 = ssub.s32 1024, 1024
          %182 = vsyncadd %s175, %s181
          %s183 = smul.addr %s179, 2
          %s184 = smul.addr %s183, 64
          %s185 = scalar_lea.hbm %s0, %s184
          %s186 = sshll.u32 %s178, 4
          %s187 = int_to_ptr.vmem [resolvable:$true] %s186
          %192 = dma.hbm_to_vmem [thread:$0]  %s185, 1024, %s187, %s175, 64, 64, 4
        $region20: #{tpu_custom_call.1} parent=15 // pred_fallthru
          _
        // Predicated region
        $region21: #{tpu_custom_call.1} parent=15 // pred_check
          %p193 = pneg %p68
        $region22: #{tpu_custom_call.1} parent=15 // pred_check_branch
          %195 = sbr.rel (%p193) target = $region24
        $region23: #{tpu_custom_call.1} parent=15 // pred_region
          %s196 = sand.u32 %s22, 1
          %s197 = scalar_lea.sflag [#allocation6], %s196
          %s198 = sand.u32 %s58, 1
          %s199 = smul.addr %s198, 64
          %s200 = scalar_lea.vmem [#allocation5], %s199
          %s201 = smul.u32 8, %s22
          %s203 = ssub.s32 1024, 1024
          %204 = vsyncadd %s197, %s203
          %s205 = smul.addr %s201, 2
          %s206 = smul.addr %s205, 64
          %s207 = scalar_lea.hbm %s1, %s206
          %s208 = sshll.u32 %s200, 4
          %s209 = int_to_ptr.vmem [resolvable:$true] %s208
          %214 = dma.hbm_to_vmem [thread:$0]  %s207, 1024, %s209, %s197, 64, 64, 4
        $region24: #{tpu_custom_call.1} parent=15 // pred_fallthru
          _
        // Predicated region
        $region25: #{tpu_custom_call.1} parent=15 // pred_check
          %p215 = pneg %p94
        $region26: #{tpu_custom_call.1} parent=15 // pred_check_branch
          %217 = sbr.rel (%p215) target = $region28
        $region27: #{tpu_custom_call.1} parent=15 // pred_region
          %s218 = sand.u32 %s22, 1
          %s219 = scalar_lea.sflag [#allocation6], %s218
          %s220 = sand.u32 %s84, 1
          %s221 = smul.addr %s220, 64
          %s222 = scalar_lea.vmem [#allocation7], %s221
          %s223 = smul.u32 8, %s22
          %s225 = ssub.s32 1024, 1024
          %226 = vsyncadd %s219, %s225
          %s227 = smul.addr %s223, 2
          %s228 = smul.addr %s227, 64
          %s229 = scalar_lea.hbm %s2, %s228
          %s230 = sshll.u32 %s222, 4
          %s231 = int_to_ptr.vmem [resolvable:$true] %s230
          %236 = dma.hbm_to_vmem [thread:$0]  %s229, 1024, %s231, %s219, 64, 64, 4
        $region28: #{tpu_custom_call.1} parent=15 // pred_fallthru
          _
        // Predicated region
        $region29: #{tpu_custom_call.1} parent=15 // pred_check
          %p237 = pneg %p120
        $region30: #{tpu_custom_call.1} parent=15 // pred_check_branch
          %239 = sbr.rel (%p237) target = $region32
        $region31: #{tpu_custom_call.1} parent=15 // pred_region
          %s240 = sand.u32 %s110, 1
          %s241 = scalar_lea.sflag [#allocation9], %s240
          %s242 = sand.u32 %s110, 1
          %s243 = smul.addr %s242, 64
          %s244 = scalar_lea.vmem [#allocation8], %s243
          %s245 = smul.u32 8, %s22
          %s247 = ssub.s32 1024, 1024
          %248 = vsyncadd %s241, %s247
          %s249 = smul.addr %s245, 2
          %s250 = smul.addr %s249, 64
          %s251 = scalar_lea.hbm %s3, %s250
          %s252 = sshll.u32 %s244, 4
          %s253 = int_to_ptr.vmem [resolvable:$true] %s252
          %258 = dma.hbm_to_vmem [thread:$0]  %s251, 1024, %s253, %s241, 64, 64, 4
        $region32: #{tpu_custom_call.1} parent=15 // pred_fallthru
          _
      $region16: #{tpu_custom_call.1} parent=5 // pred_fallthru
        _
      %p259 = scmp.le.s32.totalorder 1, %s22
      %p260 = scmp.lt.s32.totalorder %s22, 3
      %p261 = pnand %p259, %p260
      %p262 = pneg %p261
      // Predicated region
      $region33: #{tpu_custom_call.1} parent=5 // pred_check
        _
      $region34: #{tpu_custom_call.1} parent=5 // pred_check_branch
        %264 = sbr.rel (%p261) target = $region36
      $region35: #{tpu_custom_call.1} parent=5 // pred_region
        %s265 = ssub.s32 %s22, 1
        %s266 = sand.u32 %s35, 1
        %s267 = scalar_lea.sflag [#allocation3], %s266
        %s268 = sand.u32 %s35, 1
        %s269 = smul.addr %s268, 64
        %s270 = scalar_lea.vmem [#allocation2], %s269
        // Predicated region
        $region37: #{tpu_custom_call.1} parent=35 // pred_check
          %p271 = pneg %p48
        $region38: #{tpu_custom_call.1} parent=35 // pred_check_branch
          %273 = sbr.rel (%p271) target = $region40
        $region39: #{tpu_custom_call.1} parent=35 // pred_region
          %274 = dma.done %s267, 1024
        $region40: #{tpu_custom_call.1} parent=35 // pred_fallthru
          _
        %s275 = sand.u32 %s27, 1
        %s276 = scalar_lea.sflag [#allocation6], %s275
        %s277 = sand.u32 %s61, 1
        %s278 = smul.addr %s277, 64
        %s279 = scalar_lea.vmem [#allocation5], %s278
        // Predicated region
        $region41: #{tpu_custom_call.1} parent=35 // pred_check
          %p280 = pneg %p74
        $region42: #{tpu_custom_call.1} parent=35 // pred_check_branch
          %282 = sbr.rel (%p280) target = $region44
        $region43: #{tpu_custom_call.1} parent=35 // pred_region
          %283 = dma.done %s276, 1024
        $region44: #{tpu_custom_call.1} parent=35 // pred_fallthru
          _
        %s284 = sand.u32 %s27, 1
        %s285 = scalar_lea.sflag [#allocation6], %s284
        %s286 = sand.u32 %s87, 1
        %s287 = smul.addr %s286, 64
        %s288 = scalar_lea.vmem [#allocation7], %s287
        // Predicated region
        $region45: #{tpu_custom_call.1} parent=35 // pred_check
          %p289 = pneg %p100
        $region46: #{tpu_custom_call.1} parent=35 // pred_check_branch
          %291 = sbr.rel (%p289) target = $region48
        $region47: #{tpu_custom_call.1} parent=35 // pred_region
          %292 = dma.done %s285, 1024
        $region48: #{tpu_custom_call.1} parent=35 // pred_fallthru
          _
        %s293 = sand.u32 %s113, 1
        %s294 = scalar_lea.sflag [#allocation9], %s293
        %s295 = sand.u32 %s113, 1
        %s296 = smul.addr %s295, 64
        %s297 = scalar_lea.vmem [#allocation8], %s296
        // Predicated region
        $region49: #{tpu_custom_call.1} parent=35 // pred_check
          %p298 = pneg %p126
        $region50: #{tpu_custom_call.1} parent=35 // pred_check_branch
          %300 = sbr.rel (%p298) target = $region52
        $region51: #{tpu_custom_call.1} parent=35 // pred_region
          %301 = dma.done %s294, 1024
        $region52: #{tpu_custom_call.1} parent=35 // pred_fallthru
          _
        %s302 = sand.u32 %s35, 1
        %s303 = scalar_lea.sflag [#allocation3], %s302
        %s304 = sand.u32 %s35, 1
        %s305 = smul.addr %s304, 64
        %s306 = scalar_lea.vmem [#allocation2], %s305
        %p307 = pneg %p48
        %p308 = pneg %p45
        %s309 = sand.u32 %s27, 1
        %s310 = scalar_lea.sflag [#allocation6], %s309
        %s311 = sand.u32 %s61, 1
        %s312 = smul.addr %s311, 64
        %s313 = scalar_lea.vmem [#allocation5], %s312
        %p314 = pneg %p74
        %p315 = pneg %p71
        %s316 = sand.u32 %s27, 1
        %s317 = scalar_lea.sflag [#allocation6], %s316
        %s318 = sand.u32 %s87, 1
        %s319 = smul.addr %s318, 64
        %s320 = scalar_lea.vmem [#allocation7], %s319
        %p321 = pneg %p100
        %p322 = pneg %p97
        %s323 = sand.u32 %s113, 1
        %s324 = scalar_lea.sflag [#allocation9], %s323
        %s325 = sand.u32 %s113, 1
        %s326 = smul.addr %s325, 64
        %s327 = scalar_lea.vmem [#allocation8], %s326
        %p328 = pneg %p126
        %p329 = pneg %p123
        %p330 = pneg %p152
        %p331 = pneg %p149
        %s332 = sand.u32 %s139, 1
        %s333 = scalar_lea.sflag [#allocation4], %s332
        %s334 = sand.u32 %s139, 1
        %s335 = smul.addr %s334, 128
        %s336 = scalar_lea.vmem [#allocation10], %s335
        %s337 = smul.u32 8, %s27
        %s338 = smul.u32 8, %s27
        %s339 = smul.u32 8, %s27
        %s340 = smul.u32 8, %s27
        %s341 = smul.u32 8, %s27
        %v343 = vld [vmem:[%s270] sm:$0xf]
        %v344 = vld [vmem:[%s270 + $0x4] sm:$0xf]
        %v345 = vld [vmem:[%s270 + $0x8] sm:$0xf]
        %v346 = vld [vmem:[%s270 + $0xc] sm:$0xf]
        %v347 = vld [vmem:[%s270 + $0x10] sm:$0xf]
        %v348 = vld [vmem:[%s270 + $0x14] sm:$0xf]
        %v349 = vld [vmem:[%s270 + $0x18] sm:$0xf]
        %v350 = vld [vmem:[%s270 + $0x1c] sm:$0xf]
        %v351 = vld [vmem:[%s270 + $0x20] sm:$0xf]
        %v352 = vld [vmem:[%s270 + $0x24] sm:$0xf]
        %v353 = vld [vmem:[%s270 + $0x28] sm:$0xf]
        %v354 = vld [vmem:[%s270 + $0x2c] sm:$0xf]
        %v355 = vld [vmem:[%s270 + $0x30] sm:$0xf]
        %v356 = vld [vmem:[%s270 + $0x34] sm:$0xf]
        %v357 = vld [vmem:[%s270 + $0x38] sm:$0xf]
        %v358 = vld [vmem:[%s270 + $0x3c] sm:$0xf]
        %v359 = vld [vmem:[%s279] sm:$0xf]
        %v360 = vld [vmem:[%s279 + $0x4] sm:$0xf]
        %v361 = vld [vmem:[%s279 + $0x8] sm:$0xf]
        %v362 = vld [vmem:[%s279 + $0xc] sm:$0xf]
        %v363 = vld [vmem:[%s279 + $0x10] sm:$0xf]
        %v364 = vld [vmem:[%s279 + $0x14] sm:$0xf]
        %v365 = vld [vmem:[%s279 + $0x18] sm:$0xf]
        %v366 = vld [vmem:[%s279 + $0x1c] sm:$0xf]
        %v367 = vld [vmem:[%s279 + $0x20] sm:$0xf]
        %v368 = vld [vmem:[%s279 + $0x24] sm:$0xf]
        %v369 = vld [vmem:[%s279 + $0x28] sm:$0xf]
        %v370 = vld [vmem:[%s279 + $0x2c] sm:$0xf]
        %v371 = vld [vmem:[%s279 + $0x30] sm:$0xf]
        %v372 = vld [vmem:[%s279 + $0x34] sm:$0xf]
        %v373 = vld [vmem:[%s279 + $0x38] sm:$0xf]
        %v374 = vld [vmem:[%s279 + $0x3c] sm:$0xf]
        %v375 = vld [vmem:[%s288] sm:$0xf]
        %v376 = vld [vmem:[%s288 + $0x4] sm:$0xf]
        %v377 = vld [vmem:[%s288 + $0x8] sm:$0xf]
        %v378 = vld [vmem:[%s288 + $0xc] sm:$0xf]
        %v379 = vld [vmem:[%s288 + $0x10] sm:$0xf]
        %v380 = vld [vmem:[%s288 + $0x14] sm:$0xf]
        %v381 = vld [vmem:[%s288 + $0x18] sm:$0xf]
        %v382 = vld [vmem:[%s288 + $0x1c] sm:$0xf]
        %v383 = vld [vmem:[%s288 + $0x20] sm:$0xf]
        %v384 = vld [vmem:[%s288 + $0x24] sm:$0xf]
        %v385 = vld [vmem:[%s288 + $0x28] sm:$0xf]
        %v386 = vld [vmem:[%s288 + $0x2c] sm:$0xf]
        %v387 = vld [vmem:[%s288 + $0x30] sm:$0xf]
        %v388 = vld [vmem:[%s288 + $0x34] sm:$0xf]
        %v389 = vld [vmem:[%s288 + $0x38] sm:$0xf]
        %v390 = vld [vmem:[%s288 + $0x3c] sm:$0xf]
        %v391 = vld [vmem:[%s297] sm:$0xf]
        %v392 = vld [vmem:[%s297 + $0x4] sm:$0xf]
        %v393 = vld [vmem:[%s297 + $0x8] sm:$0xf]
        %v394 = vld [vmem:[%s297 + $0xc] sm:$0xf]
        %v395 = vld [vmem:[%s297 + $0x10] sm:$0xf]
        %v396 = vld [vmem:[%s297 + $0x14] sm:$0xf]
        %v397 = vld [vmem:[%s297 + $0x18] sm:$0xf]
        %v398 = vld [vmem:[%s297 + $0x1c] sm:$0xf]
        %v399 = vld [vmem:[%s297 + $0x20] sm:$0xf]
        %v400 = vld [vmem:[%s297 + $0x24] sm:$0xf]
        %v401 = vld [vmem:[%s297 + $0x28] sm:$0xf]
        %v402 = vld [vmem:[%s297 + $0x2c] sm:$0xf]
        %v403 = vld [vmem:[%s297 + $0x30] sm:$0xf]
        %v404 = vld [vmem:[%s297 + $0x34] sm:$0xf]
        %v405 = vld [vmem:[%s297 + $0x38] sm:$0xf]
        %v406 = vld [vmem:[%s297 + $0x3c] sm:$0xf]
        %v409 = vunpack.c.l.b16 %v359
        %v410 = vunpack.c.l.b16 %v360
        %v411 = vpack.c.b16 %v410, %v409
        %v414 = vunpack.c.l.b16 %v375
        %v415 = vunpack.c.l.b16 %v376
        %v416 = vpack.c.b16 %v415, %v414
        %vm418 = vcmask 130048
        %v420 = vsel %vm418, %v411, 0
        %422 = vmatprep.subr.bf16.mxu0 0
        %423 = vmatpush1.bf16.msra.mxu0 %v416
        %424 = vmatprep.subr.bf16.mxu0 0
        %425 = vmatpush1.bf16.msra.mxu0 0
        %426 = vmatprep.subr.bf16.mxu0 0
        %427 = vmatpush1.bf16.msra.mxu0 0
        %428 = vmatprep.subr.bf16.mxu0 0
        %429 = vmatpush1.bf16.msra.mxu0 0
        %430 = vmatprep.subr.bf16.mxu0 0
        %431 = vmatpush1.bf16.msra.mxu0 0
        %432 = vmatprep.subr.bf16.mxu0 0
        %433 = vmatpush1.bf16.msra.mxu0 0
        %434 = vmatprep.subr.bf16.mxu0 0
        %435 = vmatpush1.bf16.msra.mxu0 0
        %436 = vmatprep.subr.bf16.mxu0 0
        %437 = vmatpush1.bf16.msra.mxu0 0
        %438 = vmatprep.subr.bf16.mxu0 0
        %439 = vmatpush1.bf16.msra.mxu0 0
        %440 = vmatprep.subr.bf16.mxu0 0
        %441 = vmatpush1.bf16.msra.mxu0 0
        %442 = vmatprep.subr.bf16.mxu0 0
        %443 = vmatpush1.bf16.msra.mxu0 0
        %444 = vmatprep.subr.bf16.mxu0 0
        %445 = vmatpush1.bf16.msra.mxu0 0
        %446 = vmatprep.subr.bf16.mxu0 0
        %447 = vmatpush1.bf16.msra.mxu0 0
        %448 = vmatprep.subr.bf16.mxu0 0
        %449 = vmatpush1.bf16.msra.mxu0 0
        %450 = vmatprep.subr.bf16.mxu0 0
        %451 = vmatpush1.bf16.msra.mxu0 0
        %452 = vmatprep.subr.bf16.mxu0 0
        %453 = vmatpush1.bf16.msra.mxu0 0
        %454 = vmatprep.mubr.bf16.mxu0 0
        %455 = vmatmul.mubr.bf16.gmra.mrb[0].mxu0 %v420
        %v456 = vpop.f32.mrb[0].mxu0
        %v457 = vadd.f32 0.0, %v456
        %v458 = vpop.f32.mrb[0].mxu0
        %v459 = vpop.f32.mrb[0].mxu0
        %v460 = vadd.f32 0.0, %v459
        %v461 = vpop.f32.mrb[0].mxu0
        %462 = vdwg.mxu0
        %v465 = vunpack.c.l.b16 %v361
        %v466 = vunpack.c.l.b16 %v362
        %v467 = vpack.c.b16 %v466, %v465
        %v470 = vunpack.c.l.b16 %v377
        %v471 = vunpack.c.l.b16 %v378
        %v472 = vpack.c.b16 %v471, %v470
        %v475 = vsel %vm418, %v467, 0
        %477 = vmatprep.subr.bf16.mxu0 0
        %478 = vmatpush1.bf16.msra.mxu0 %v472
        %479 = vmatprep.subr.bf16.mxu0 0
        %480 = vmatpush1.bf16.msra.mxu0 0
        %481 = vmatprep.subr.bf16.mxu0 0
        %482 = vmatpush1.bf16.msra.mxu0 0
        %483 = vmatprep.subr.bf16.mxu0 0
        %484 = vmatpush1.bf16.msra.mxu0 0
        %485 = vmatprep.subr.bf16.mxu0 0
        %486 = vmatpush1.bf16.msra.mxu0 0
        %487 = vmatprep.subr.bf16.mxu0 0
        %488 = vmatpush1.bf16.msra.mxu0 0
        %489 = vmatprep.subr.bf16.mxu0 0
        %490 = vmatpush1.bf16.msra.mxu0 0
        %491 = vmatprep.subr.bf16.mxu0 0
        %492 = vmatpush1.bf16.msra.mxu0 0
        %493 = vmatprep.subr.bf16.mxu0 0
        %494 = vmatpush1.bf16.msra.mxu0 0
        %495 = vmatprep.subr.bf16.mxu0 0
        %496 = vmatpush1.bf16.msra.mxu0 0
        %497 = vmatprep.subr.bf16.mxu0 0
        %498 = vmatpush1.bf16.msra.mxu0 0
        %499 = vmatprep.subr.bf16.mxu0 0
        %500 = vmatpush1.bf16.msra.mxu0 0
        %501 = vmatprep.subr.bf16.mxu0 0
        %502 = vmatpush1.bf16.msra.mxu0 0
        %503 = vmatprep.subr.bf16.mxu0 0
        %504 = vmatpush1.bf16.msra.mxu0 0
        %505 = vmatprep.subr.bf16.mxu0 0
        %506 = vmatpush1.bf16.msra.mxu0 0
        %507 = vmatprep.subr.bf16.mxu0 0
        %508 = vmatpush1.bf16.msra.mxu0 0
        %509 = vmatprep.mubr.bf16.mxu0 0
        %510 = vmatmul.mubr.bf16.gmra.mrb[0].mxu0 %v475
        %v511 = vpop.f32.mrb[0].mxu0
        %v512 = vadd.f32 0.0, %v511
        %v513 = vpop.f32.mrb[0].mxu0
        %v514 = vpop.f32.mrb[0].mxu0
        %v515 = vadd.f32 0.0, %v514
        %v516 = vpop.f32.mrb[0].mxu0
        %517 = vdwg.mxu0
        %v520 = vunpack.c.l.b16 %v363
        %v521 = vunpack.c.l.b16 %v364
        %v522 = vpack.c.b16 %v521, %v520
        %v525 = vunpack.c.l.b16 %v379
        %v526 = vunpack.c.l.b16 %v380
        %v527 = vpack.c.b16 %v526, %v525
        %v530 = vsel %vm418, %v522, 0
        %532 = vmatprep.subr.bf16.mxu0 0
        %533 = vmatpush1.bf16.msra.mxu0 %v527
        %534 = vmatprep.subr.bf16.mxu0 0
        %535 = vmatpush1.bf16.msra.mxu0 0
        %536 = vmatprep.subr.bf16.mxu0 0
        %537 = vmatpush1.bf16.msra.mxu0 0
        %538 = vmatprep.subr.bf16.mxu0 0
        %539 = vmatpush1.bf16.msra.mxu0 0
        %540 = vmatprep.subr.bf16.mxu0 0
        %541 = vmatpush1.bf16.msra.mxu0 0
        %542 = vmatprep.subr.bf16.mxu0 0
        %543 = vmatpush1.bf16.msra.mxu0 0
        %544 = vmatprep.subr.bf16.mxu0 0
        %545 = vmatpush1.bf16.msra.mxu0 0
        %546 = vmatprep.subr.bf16.mxu0 0
        %547 = vmatpush1.bf16.msra.mxu0 0
        %548 = vmatprep.subr.bf16.mxu0 0
        %549 = vmatpush1.bf16.msra.mxu0 0
        %550 = vmatprep.subr.bf16.mxu0 0
        %551 = vmatpush1.bf16.msra.mxu0 0
        %552 = vmatprep.subr.bf16.mxu0 0
        %553 = vmatpush1.bf16.msra.mxu0 0
        %554 = vmatprep.subr.bf16.mxu0 0
        %555 = vmatpush1.bf16.msra.mxu0 0
        %556 = vmatprep.subr.bf16.mxu0 0
        %557 = vmatpush1.bf16.msra.mxu0 0
        %558 = vmatprep.subr.bf16.mxu0 0
        %559 = vmatpush1.bf16.msra.mxu0 0
        %560 = vmatprep.subr.bf16.mxu0 0
        %561 = vmatpush1.bf16.msra.mxu0 0
        %562 = vmatprep.subr.bf16.mxu0 0
        %563 = vmatpush1.bf16.msra.mxu0 0
        %564 = vmatprep.mubr.bf16.mxu0 0
        %565 = vmatmul.mubr.bf16.gmra.mrb[0].mxu0 %v530
        %v566 = vpop.f32.mrb[0].mxu0
        %v567 = vadd.f32 0.0, %v566
        %v568 = vpop.f32.mrb[0].mxu0
        %v569 = vpop.f32.mrb[0].mxu0
        %v570 = vadd.f32 0.0, %v569
        %v571 = vpop.f32.mrb[0].mxu0
        %572 = vdwg.mxu0
        %v575 = vunpack.c.l.b16 %v365
        %v576 = vunpack.c.l.b16 %v366
        %v577 = vpack.c.b16 %v576, %v575
        %v580 = vunpack.c.l.b16 %v381
        %v581 = vunpack.c.l.b16 %v382
        %v582 = vpack.c.b16 %v581, %v580
        %v585 = vsel %vm418, %v577, 0
        %587 = vmatprep.subr.bf16.mxu0 0
        %588 = vmatpush1.bf16.msra.mxu0 %v582
        %589 = vmatprep.subr.bf16.mxu0 0
        %590 = vmatpush1.bf16.msra.mxu0 0
        %591 = vmatprep.subr.bf16.mxu0 0
        %592 = vmatpush1.bf16.msra.mxu0 0
        %593 = vmatprep.subr.bf16.mxu0 0
        %594 = vmatpush1.bf16.msra.mxu0 0
        %595 = vmatprep.subr.bf16.mxu0 0
        %596 = vmatpush1.bf16.msra.mxu0 0
        %597 = vmatprep.subr.bf16.mxu0 0
        %598 = vmatpush1.bf16.msra.mxu0 0
        %599 = vmatprep.subr.bf16.mxu0 0
        %600 = vmatpush1.bf16.msra.mxu0 0
        %601 = vmatprep.subr.bf16.mxu0 0
        %602 = vmatpush1.bf16.msra.mxu0 0
        %603 = vmatprep.subr.bf16.mxu0 0
        %604 = vmatpush1.bf16.msra.mxu0 0
        %605 = vmatprep.subr.bf16.mxu0 0
        %606 = vmatpush1.bf16.msra.mxu0 0
        %607 = vmatprep.subr.bf16.mxu0 0
        %608 = vmatpush1.bf16.msra.mxu0 0
        %609 = vmatprep.subr.bf16.mxu0 0
        %610 = vmatpush1.bf16.msra.mxu0 0
        %611 = vmatprep.subr.bf16.mxu0 0
        %612 = vmatpush1.bf16.msra.mxu0 0
        %613 = vmatprep.subr.bf16.mxu0 0
        %614 = vmatpush1.bf16.msra.mxu0 0
        %615 = vmatprep.subr.bf16.mxu0 0
        %616 = vmatpush1.bf16.msra.mxu0 0
        %617 = vmatprep.subr.bf16.mxu0 0
        %618 = vmatpush1.bf16.msra.mxu0 0
        %619 = vmatprep.mubr.bf16.mxu0 0
        %620 = vmatmul.mubr.bf16.gmra.mrb[0].mxu0 %v585
        %v621 = vpop.f32.mrb[0].mxu0
        %v622 = vadd.f32 0.0, %v621
        %v623 = vpop.f32.mrb[0].mxu0
        %v624 = vpop.f32.mrb[0].mxu0
        %v625 = vadd.f32 0.0, %v624
        %v626 = vpop.f32.mrb[0].mxu0
        %627 = vdwg.mxu0
        %v630 = vunpack.c.l.b16 %v367
        %v631 = vunpack.c.l.b16 %v368
        %v632 = vpack.c.b16 %v631, %v630
        %v635 = vunpack.c.l.b16 %v383
        %v636 = vunpack.c.l.b16 %v384
        %v637 = vpack.c.b16 %v636, %v635
        %v640 = vsel %vm418, %v632, 0
        %642 = vmatprep.subr.bf16.mxu0 0
        %643 = vmatpush1.bf16.msra.mxu0 %v637
        %644 = vmatprep.subr.bf16.mxu0 0
        %645 = vmatpush1.bf16.msra.mxu0 0
        %646 = vmatprep.subr.bf16.mxu0 0
        %647 = vmatpush1.bf16.msra.mxu0 0
        %648 = vmatprep.subr.bf16.mxu0 0
        %649 = vmatpush1.bf16.msra.mxu0 0
        %650 = vmatprep.subr.bf16.mxu0 0
        %651 = vmatpush1.bf16.msra.mxu0 0
        %652 = vmatprep.subr.bf16.mxu0 0
        %653 = vmatpush1.bf16.msra.mxu0 0
        %654 = vmatprep.subr.bf16.mxu0 0
        %655 = vmatpush1.bf16.msra.mxu0 0
        %656 = vmatprep.subr.bf16.mxu0 0
        %657 = vmatpush1.bf16.msra.mxu0 0
        %658 = vmatprep.subr.bf16.mxu0 0
        %659 = vmatpush1.bf16.msra.mxu0 0
        %660 = vmatprep.subr.bf16.mxu0 0
        %661 = vmatpush1.bf16.msra.mxu0 0
        %662 = vmatprep.subr.bf16.mxu0 0
        %663 = vmatpush1.bf16.msra.mxu0 0
        %664 = vmatprep.subr.bf16.mxu0 0
        %665 = vmatpush1.bf16.msra.mxu0 0
        %666 = vmatprep.subr.bf16.mxu0 0
        %667 = vmatpush1.bf16.msra.mxu0 0
        %668 = vmatprep.subr.bf16.mxu0 0
        %669 = vmatpush1.bf16.msra.mxu0 0
        %670 = vmatprep.subr.bf16.mxu0 0
        %671 = vmatpush1.bf16.msra.mxu0 0
        %672 = vmatprep.subr.bf16.mxu0 0
        %673 = vmatpush1.bf16.msra.mxu0 0
        %674 = vmatprep.mubr.bf16.mxu0 0
        %675 = vmatmul.mubr.bf16.gmra.mrb[0].mxu0 %v640
        %v676 = vpop.f32.mrb[0].mxu0
        %v677 = vadd.f32 0.0, %v676
        %v678 = vpop.f32.mrb[0].mxu0
        %v679 = vpop.f32.mrb[0].mxu0
        %v680 = vadd.f32 0.0, %v679
        %v681 = vpop.f32.mrb[0].mxu0
        %682 = vdwg.mxu0
        %v685 = vunpack.c.l.b16 %v369
        %v686 = vunpack.c.l.b16 %v370
        %v687 = vpack.c.b16 %v686, %v685
        %v690 = vunpack.c.l.b16 %v385
        %v691 = vunpack.c.l.b16 %v386
        %v692 = vpack.c.b16 %v691, %v690
        %v695 = vsel %vm418, %v687, 0
        %697 = vmatprep.subr.bf16.mxu0 0
        %698 = vmatpush1.bf16.msra.mxu0 %v692
        %699 = vmatprep.subr.bf16.mxu0 0
        %700 = vmatpush1.bf16.msra.mxu0 0
        %701 = vmatprep.subr.bf16.mxu0 0
        %702 = vmatpush1.bf16.msra.mxu0 0
        %703 = vmatprep.subr.bf16.mxu0 0
        %704 = vmatpush1.bf16.msra.mxu0 0
        %705 = vmatprep.subr.bf16.mxu0 0
        %706 = vmatpush1.bf16.msra.mxu0 0
        %707 = vmatprep.subr.bf16.mxu0 0
        %708 = vmatpush1.bf16.msra.mxu0 0
        %709 = vmatprep.subr.bf16.mxu0 0
        %710 = vmatpush1.bf16.msra.mxu0 0
        %711 = vmatprep.subr.bf16.mxu0 0
        %712 = vmatpush1.bf16.msra.mxu0 0
        %713 = vmatprep.subr.bf16.mxu0 0
        %714 = vmatpush1.bf16.msra.mxu0 0
        %715 = vmatprep.subr.bf16.mxu0 0
        %716 = vmatpush1.bf16.msra.mxu0 0
        %717 = vmatprep.subr.bf16.mxu0 0
        %718 = vmatpush1.bf16.msra.mxu0 0
        %719 = vmatprep.subr.bf16.mxu0 0
        %720 = vmatpush1.bf16.msra.mxu0 0
        %721 = vmatprep.subr.bf16.mxu0 0
        %722 = vmatpush1.bf16.msra.mxu0 0
        %723 = vmatprep.subr.bf16.mxu0 0
        %724 = vmatpush1.bf16.msra.mxu0 0
        %725 = vmatprep.subr.bf16.mxu0 0
        %726 = vmatpush1.bf16.msra.mxu0 0
        %727 = vmatprep.subr.bf16.mxu0 0
        %728 = vmatpush1.bf16.msra.mxu0 0
        %729 = vmatprep.mubr.bf16.mxu0 0
        %730 = vmatmul.mubr.bf16.gmra.mrb[0].mxu0 %v695
        %v731 = vpop.f32.mrb[0].mxu0
        %v732 = vadd.f32 0.0, %v731
        %v733 = vpop.f32.mrb[0].mxu0
        %v734 = vpop.f32.mrb[0].mxu0
        %v735 = vadd.f32 0.0, %v734
        %v736 = vpop.f32.mrb[0].mxu0
        %737 = vdwg.mxu0
        %v740 = vunpack.c.l.b16 %v371
        %v741 = vunpack.c.l.b16 %v372
        %v742 = vpack.c.b16 %v741, %v740
        %v745 = vunpack.c.l.b16 %v387
        %v746 = vunpack.c.l.b16 %v388
        %v747 = vpack.c.b16 %v746, %v745
        %v750 = vsel %vm418, %v742, 0
        %752 = vmatprep.subr.bf16.mxu0 0
        %753 = vmatpush1.bf16.msra.mxu0 %v747
        %754 = vmatprep.subr.bf16.mxu0 0
        %755 = vmatpush1.bf16.msra.mxu0 0
        %756 = vmatprep.subr.bf16.mxu0 0
        %757 = vmatpush1.bf16.msra.mxu0 0
        %758 = vmatprep.subr.bf16.mxu0 0
        %759 = vmatpush1.bf16.msra.mxu0 0
        %760 = vmatprep.subr.bf16.mxu0 0
        %761 = vmatpush1.bf16.msra.mxu0 0
        %762 = vmatprep.subr.bf16.mxu0 0
        %763 = vmatpush1.bf16.msra.mxu0 0
        %764 = vmatprep.subr.bf16.mxu0 0
        %765 = vmatpush1.bf16.msra.mxu0 0
        %766 = vmatprep.subr.bf16.mxu0 0
        %767 = vmatpush1.bf16.msra.mxu0 0
        %768 = vmatprep.subr.bf16.mxu0 0
        %769 = vmatpush1.bf16.msra.mxu0 0
        %770 = vmatprep.subr.bf16.mxu0 0
        %771 = vmatpush1.bf16.msra.mxu0 0
        %772 = vmatprep.subr.bf16.mxu0 0
        %773 = vmatpush1.bf16.msra.mxu0 0
        %774 = vmatprep.subr.bf16.mxu0 0
        %775 = vmatpush1.bf16.msra.mxu0 0
        %776 = vmatprep.subr.bf16.mxu0 0
        %777 = vmatpush1.bf16.msra.mxu0 0
        %778 = vmatprep.subr.bf16.mxu0 0
        %779 = vmatpush1.bf16.msra.mxu0 0
        %780 = vmatprep.subr.bf16.mxu0 0
        %781 = vmatpush1.bf16.msra.mxu0 0
        %782 = vmatprep.subr.bf16.mxu0 0
        %783 = vmatpush1.bf16.msra.mxu0 0
        %784 = vmatprep.mubr.bf16.mxu0 0
        %785 = vmatmul.mubr.bf16.gmra.mrb[0].mxu0 %v750
        %v786 = vpop.f32.mrb[0].mxu0
        %v787 = vadd.f32 0.0, %v786
        %v788 = vpop.f32.mrb[0].mxu0
        %v789 = vpop.f32.mrb[0].mxu0
        %v790 = vadd.f32 0.0, %v789
        %v791 = vpop.f32.mrb[0].mxu0
        %792 = vdwg.mxu0
        %v795 = vunpack.c.l.b16 %v373
        %v796 = vunpack.c.l.b16 %v374
        %v797 = vpack.c.b16 %v796, %v795
        %v800 = vunpack.c.l.b16 %v389
        %v801 = vunpack.c.l.b16 %v390
        %v802 = vpack.c.b16 %v801, %v800
        %v805 = vsel %vm418, %v797, 0
        %807 = vmatprep.subr.bf16.mxu0 0
        %808 = vmatpush1.bf16.msra.mxu0 %v802
        %809 = vmatprep.subr.bf16.mxu0 0
        %810 = vmatpush1.bf16.msra.mxu0 0
        %811 = vmatprep.subr.bf16.mxu0 0
        %812 = vmatpush1.bf16.msra.mxu0 0
        %813 = vmatprep.subr.bf16.mxu0 0
        %814 = vmatpush1.bf16.msra.mxu0 0
        %815 = vmatprep.subr.bf16.mxu0 0
        %816 = vmatpush1.bf16.msra.mxu0 0
        %817 = vmatprep.subr.bf16.mxu0 0
        %818 = vmatpush1.bf16.msra.mxu0 0
        %819 = vmatprep.subr.bf16.mxu0 0
        %820 = vmatpush1.bf16.msra.mxu0 0
        %821 = vmatprep.subr.bf16.mxu0 0
        %822 = vmatpush1.bf16.msra.mxu0 0
        %823 = vmatprep.subr.bf16.mxu0 0
        %824 = vmatpush1.bf16.msra.mxu0 0
        %825 = vmatprep.subr.bf16.mxu0 0
        %826 = vmatpush1.bf16.msra.mxu0 0
        %827 = vmatprep.subr.bf16.mxu0 0
        %828 = vmatpush1.bf16.msra.mxu0 0
        %829 = vmatprep.subr.bf16.mxu0 0
        %830 = vmatpush1.bf16.msra.mxu0 0
        %831 = vmatprep.subr.bf16.mxu0 0
        %832 = vmatpush1.bf16.msra.mxu0 0
        %833 = vmatprep.subr.bf16.mxu0 0
        %834 = vmatpush1.bf16.msra.mxu0 0
        %835 = vmatprep.subr.bf16.mxu0 0
        %836 = vmatpush1.bf16.msra.mxu0 0
        %837 = vmatprep.subr.bf16.mxu0 0
        %838 = vmatpush1.bf16.msra.mxu0 0
        %839 = vmatprep.mubr.bf16.mxu0 0
        %840 = vmatmul.mubr.bf16.gmra.mrb[0].mxu0 %v805
        %v841 = vpop.f32.mrb[0].mxu0
        %v842 = vadd.f32 0.0, %v841
        %v843 = vpop.f32.mrb[0].mxu0
        %v844 = vpop.f32.mrb[0].mxu0
        %v845 = vadd.f32 0.0, %v844
        %v846 = vpop.f32.mrb[0].mxu0
        %847 = vdwg.mxu0
        %v850 = vunpack.c.l.b16 %v343
        %v851 = vunpack.c.l.b16 %v344
        %v852 = vpack.c.b16 %v851, %v850
        %v854 = vsel %vm418, %v852, 0
        %856 = vmatprep.subr.bf16.mxu0 0
        %857 = vmatpush1.bf16.msra.mxu0 %v416
        %858 = vmatprep.subr.bf16.mxu0 0
        %859 = vmatpush1.bf16.msra.mxu0 0
        %860 = vmatprep.subr.bf16.mxu0 0
        %861 = vmatpush1.bf16.msra.mxu0 0
        %862 = vmatprep.subr.bf16.mxu0 0
        %863 = vmatpush1.bf16.msra.mxu0 0
        %864 = vmatprep.subr.bf16.mxu0 0
        %865 = vmatpush1.bf16.msra.mxu0 0
        %866 = vmatprep.subr.bf16.mxu0 0
        %867 = vmatpush1.bf16.msra.mxu0 0
        %868 = vmatprep.subr.bf16.mxu0 0
        %869 = vmatpush1.bf16.msra.mxu0 0
        %870 = vmatprep.subr.bf16.mxu0 0
        %871 = vmatpush1.bf16.msra.mxu0 0
        %872 = vmatprep.subr.bf16.mxu0 0
        %873 = vmatpush1.bf16.msra.mxu0 0
        %874 = vmatprep.subr.bf16.mxu0 0
        %875 = vmatpush1.bf16.msra.mxu0 0
        %876 = vmatprep.subr.bf16.mxu0 0
        %877 = vmatpush1.bf16.msra.mxu0 0
        %878 = vmatprep.subr.bf16.mxu0 0
        %879 = vmatpush1.bf16.msra.mxu0 0
        %880 = vmatprep.subr.bf16.mxu0 0
        %881 = vmatpush1.bf16.msra.mxu0 0
        %882 = vmatprep.subr.bf16.mxu0 0
        %883 = vmatpush1.bf16.msra.mxu0 0
        %884 = vmatprep.subr.bf16.mxu0 0
        %885 = vmatpush1.bf16.msra.mxu0 0
        %886 = vmatprep.subr.bf16.mxu0 0
        %887 = vmatpush1.bf16.msra.mxu0 0
        %888 = vmatprep.mubr.bf16.mxu0 0
        %889 = vmatmul.mubr.bf16.gmra.mrb[0].mxu0 %v854
        %v890 = vpop.f32.mrb[0].mxu0
        %v891 = vadd.f32 %v457, %v890
        %v892 = vpop.f32.mrb[0].mxu0
        %v893 = vpop.f32.mrb[0].mxu0
        %v894 = vadd.f32 %v460, %v893
        %v895 = vpop.f32.mrb[0].mxu0
        %896 = vdwg.mxu0
        %v899 = vunpack.c.l.b16 %v345
        %v900 = vunpack.c.l.b16 %v346
        %v901 = vpack.c.b16 %v900, %v899
        %v903 = vsel %vm418, %v901, 0
        %905 = vmatprep.subr.bf16.mxu0 0
        %906 = vmatpush1.bf16.msra.mxu0 %v472
        %907 = vmatprep.subr.bf16.mxu0 0
        %908 = vmatpush1.bf16.msra.mxu0 0
        %909 = vmatprep.subr.bf16.mxu0 0
        %910 = vmatpush1.bf16.msra.mxu0 0
        %911 = vmatprep.subr.bf16.mxu0 0
        %912 = vmatpush1.bf16.msra.mxu0 0
        %913 = vmatprep.subr.bf16.mxu0 0
        %914 = vmatpush1.bf16.msra.mxu0 0
        %915 = vmatprep.subr.bf16.mxu0 0
        %916 = vmatpush1.bf16.msra.mxu0 0
        %917 = vmatprep.subr.bf16.mxu0 0
        %918 = vmatpush1.bf16.msra.mxu0 0
        %919 = vmatprep.subr.bf16.mxu0 0
        %920 = vmatpush1.bf16.msra.mxu0 0
        %921 = vmatprep.subr.bf16.mxu0 0
        %922 = vmatpush1.bf16.msra.mxu0 0
        %923 = vmatprep.subr.bf16.mxu0 0
        %924 = vmatpush1.bf16.msra.mxu0 0
        %925 = vmatprep.subr.bf16.mxu0 0
        %926 = vmatpush1.bf16.msra.mxu0 0
        %927 = vmatprep.subr.bf16.mxu0 0
        %928 = vmatpush1.bf16.msra.mxu0 0
        %929 = vmatprep.subr.bf16.mxu0 0
        %930 = vmatpush1.bf16.msra.mxu0 0
        %931 = vmatprep.subr.bf16.mxu0 0
        %932 = vmatpush1.bf16.msra.mxu0 0
        %933 = vmatprep.subr.bf16.mxu0 0
        %934 = vmatpush1.bf16.msra.mxu0 0
        %935 = vmatprep.subr.bf16.mxu0 0
        %936 = vmatpush1.bf16.msra.mxu0 0
        %937 = vmatprep.mubr.bf16.mxu0 0
        %938 = vmatmul.mubr.bf16.gmra.mrb[0].mxu0 %v903
        %v939 = vpop.f32.mrb[0].mxu0
        %v940 = vadd.f32 %v512, %v939
        %v941 = vpop.f32.mrb[0].mxu0
        %v942 = vpop.f32.mrb[0].mxu0
        %v943 = vadd.f32 %v515, %v942
        %v944 = vpop.f32.mrb[0].mxu0
        %945 = vdwg.mxu0
        %v948 = vunpack.c.l.b16 %v347
        %v949 = vunpack.c.l.b16 %v348
        %v950 = vpack.c.b16 %v949, %v948
        %v952 = vsel %vm418, %v950, 0
        %954 = vmatprep.subr.bf16.mxu0 0
        %955 = vmatpush1.bf16.msra.mxu0 %v527
        %956 = vmatprep.subr.bf16.mxu0 0
        %957 = vmatpush1.bf16.msra.mxu0 0
        %958 = vmatprep.subr.bf16.mxu0 0
        %959 = vmatpush1.bf16.msra.mxu0 0
        %960 = vmatprep.subr.bf16.mxu0 0
        %961 = vmatpush1.bf16.msra.mxu0 0
        %962 = vmatprep.subr.bf16.mxu0 0
        %963 = vmatpush1.bf16.msra.mxu0 0
        %964 = vmatprep.subr.bf16.mxu0 0
        %965 = vmatpush1.bf16.msra.mxu0 0
        %966 = vmatprep.subr.bf16.mxu0 0
        %967 = vmatpush1.bf16.msra.mxu0 0
        %968 = vmatprep.subr.bf16.mxu0 0
        %969 = vmatpush1.bf16.msra.mxu0 0
        %970 = vmatprep.subr.bf16.mxu0 0
        %971 = vmatpush1.bf16.msra.mxu0 0
        %972 = vmatprep.subr.bf16.mxu0 0
        %973 = vmatpush1.bf16.msra.mxu0 0
        %974 = vmatprep.subr.bf16.mxu0 0
        %975 = vmatpush1.bf16.msra.mxu0 0
        %976 = vmatprep.subr.bf16.mxu0 0
        %977 = vmatpush1.bf16.msra.mxu0 0
        %978 = vmatprep.subr.bf16.mxu0 0
        %979 = vmatpush1.bf16.msra.mxu0 0
        %980 = vmatprep.subr.bf16.mxu0 0
        %981 = vmatpush1.bf16.msra.mxu0 0
        %982 = vmatprep.subr.bf16.mxu0 0
        %983 = vmatpush1.bf16.msra.mxu0 0
        %984 = vmatprep.subr.bf16.mxu0 0
        %985 = vmatpush1.bf16.msra.mxu0 0
        %986 = vmatprep.mubr.bf16.mxu0 0
        %987 = vmatmul.mubr.bf16.gmra.mrb[0].mxu0 %v952
        %v988 = vpop.f32.mrb[0].mxu0
        %v989 = vadd.f32 %v567, %v988
        %v990 = vpop.f32.mrb[0].mxu0
        %v991 = vpop.f32.mrb[0].mxu0
        %v992 = vadd.f32 %v570, %v991
        %v993 = vpop.f32.mrb[0].mxu0
        %994 = vdwg.mxu0
        %v997 = vunpack.c.l.b16 %v349
        %v998 = vunpack.c.l.b16 %v350
        %v999 = vpack.c.b16 %v998, %v997
        %v1001 = vsel %vm418, %v999, 0
        %1003 = vmatprep.subr.bf16.mxu0 0
        %1004 = vmatpush1.bf16.msra.mxu0 %v582
        %1005 = vmatprep.subr.bf16.mxu0 0
        %1006 = vmatpush1.bf16.msra.mxu0 0
        %1007 = vmatprep.subr.bf16.mxu0 0
        %1008 = vmatpush1.bf16.msra.mxu0 0
        %1009 = vmatprep.subr.bf16.mxu0 0
        %1010 = vmatpush1.bf16.msra.mxu0 0
        %1011 = vmatprep.subr.bf16.mxu0 0
        %1012 = vmatpush1.bf16.msra.mxu0 0
        %1013 = vmatprep.subr.bf16.mxu0 0
        %1014 = vmatpush1.bf16.msra.mxu0 0
        %1015 = vmatprep.subr.bf16.mxu0 0
        %1016 = vmatpush1.bf16.msra.mxu0 0
        %1017 = vmatprep.subr.bf16.mxu0 0
        %1018 = vmatpush1.bf16.msra.mxu0 0
        %1019 = vmatprep.subr.bf16.mxu0 0
        %1020 = vmatpush1.bf16.msra.mxu0 0
        %1021 = vmatprep.subr.bf16.mxu0 0
        %1022 = vmatpush1.bf16.msra.mxu0 0
        %1023 = vmatprep.subr.bf16.mxu0 0
        %1024 = vmatpush1.bf16.msra.mxu0 0
        %1025 = vmatprep.subr.bf16.mxu0 0
        %1026 = vmatpush1.bf16.msra.mxu0 0
        %1027 = vmatprep.subr.bf16.mxu0 0
        %1028 = vmatpush1.bf16.msra.mxu0 0
        %1029 = vmatprep.subr.bf16.mxu0 0
        %1030 = vmatpush1.bf16.msra.mxu0 0
        %1031 = vmatprep.subr.bf16.mxu0 0
        %1032 = vmatpush1.bf16.msra.mxu0 0
        %1033 = vmatprep.subr.bf16.mxu0 0
        %1034 = vmatpush1.bf16.msra.mxu0 0
        %1035 = vmatprep.mubr.bf16.mxu0 0
        %1036 = vmatmul.mubr.bf16.gmra.mrb[0].mxu0 %v1001
        %v1037 = vpop.f32.mrb[0].mxu0
        %v1038 = vadd.f32 %v622, %v1037
        %v1039 = vpop.f32.mrb[0].mxu0
        %v1040 = vpop.f32.mrb[0].mxu0
        %v1041 = vadd.f32 %v625, %v1040
        %v1042 = vpop.f32.mrb[0].mxu0
        %1043 = vdwg.mxu0
        %v1046 = vunpack.c.l.b16 %v351
        %v1047 = vunpack.c.l.b16 %v352
        %v1048 = vpack.c.b16 %v1047, %v1046
        %v1050 = vsel %vm418, %v1048, 0
        %1052 = vmatprep.subr.bf16.mxu0 0
        %1053 = vmatpush1.bf16.msra.mxu0 %v637
        %1054 = vmatprep.subr.bf16.mxu0 0
        %1055 = vmatpush1.bf16.msra.mxu0 0
        %1056 = vmatprep.subr.bf16.mxu0 0
        %1057 = vmatpush1.bf16.msra.mxu0 0
        %1058 = vmatprep.subr.bf16.mxu0 0
        %1059 = vmatpush1.bf16.msra.mxu0 0
        %1060 = vmatprep.subr.bf16.mxu0 0
        %1061 = vmatpush1.bf16.msra.mxu0 0
        %1062 = vmatprep.subr.bf16.mxu0 0
        %1063 = vmatpush1.bf16.msra.mxu0 0
        %1064 = vmatprep.subr.bf16.mxu0 0
        %1065 = vmatpush1.bf16.msra.mxu0 0
        %1066 = vmatprep.subr.bf16.mxu0 0
        %1067 = vmatpush1.bf16.msra.mxu0 0
        %1068 = vmatprep.subr.bf16.mxu0 0
        %1069 = vmatpush1.bf16.msra.mxu0 0
        %1070 = vmatprep.subr.bf16.mxu0 0
        %1071 = vmatpush1.bf16.msra.mxu0 0
        %1072 = vmatprep.subr.bf16.mxu0 0
        %1073 = vmatpush1.bf16.msra.mxu0 0
        %1074 = vmatprep.subr.bf16.mxu0 0
        %1075 = vmatpush1.bf16.msra.mxu0 0
        %1076 = vmatprep.subr.bf16.mxu0 0
        %1077 = vmatpush1.bf16.msra.mxu0 0
        %1078 = vmatprep.subr.bf16.mxu0 0
        %1079 = vmatpush1.bf16.msra.mxu0 0
        %1080 = vmatprep.subr.bf16.mxu0 0
        %1081 = vmatpush1.bf16.msra.mxu0 0
        %1082 = vmatprep.subr.bf16.mxu0 0
        %1083 = vmatpush1.bf16.msra.mxu0 0
        %1084 = vmatprep.mubr.bf16.mxu0 0
        %1085 = vmatmul.mubr.bf16.gmra.mrb[0].mxu0 %v1050
        %v1086 = vpop.f32.mrb[0].mxu0
        %v1087 = vadd.f32 %v677, %v1086
        %v1088 = vpop.f32.mrb[0].mxu0
        %v1089 = vpop.f32.mrb[0].mxu0
        %v1090 = vadd.f32 %v680, %v1089
        %v1091 = vpop.f32.mrb[0].mxu0
        %1092 = vdwg.mxu0
        %v1095 = vunpack.c.l.b16 %v353
        %v1096 = vunpack.c.l.b16 %v354
        %v1097 = vpack.c.b16 %v1096, %v1095
        %v1099 = vsel %vm418, %v1097, 0
        %1101 = vmatprep.subr.bf16.mxu0 0
        %1102 = vmatpush1.bf16.msra.mxu0 %v692
        %1103 = vmatprep.subr.bf16.mxu0 0
        %1104 = vmatpush1.bf16.msra.mxu0 0
        %1105 = vmatprep.subr.bf16.mxu0 0
        %1106 = vmatpush1.bf16.msra.mxu0 0
        %1107 = vmatprep.subr.bf16.mxu0 0
        %1108 = vmatpush1.bf16.msra.mxu0 0
        %1109 = vmatprep.subr.bf16.mxu0 0
        %1110 = vmatpush1.bf16.msra.mxu0 0
        %1111 = vmatprep.subr.bf16.mxu0 0
        %1112 = vmatpush1.bf16.msra.mxu0 0
        %1113 = vmatprep.subr.bf16.mxu0 0
        %1114 = vmatpush1.bf16.msra.mxu0 0
        %1115 = vmatprep.subr.bf16.mxu0 0
        %1116 = vmatpush1.bf16.msra.mxu0 0
        %1117 = vmatprep.subr.bf16.mxu0 0
        %1118 = vmatpush1.bf16.msra.mxu0 0
        %1119 = vmatprep.subr.bf16.mxu0 0
        %1120 = vmatpush1.bf16.msra.mxu0 0
        %1121 = vmatprep.subr.bf16.mxu0 0
        %1122 = vmatpush1.bf16.msra.mxu0 0
        %1123 = vmatprep.subr.bf16.mxu0 0
        %1124 = vmatpush1.bf16.msra.mxu0 0
        %1125 = vmatprep.subr.bf16.mxu0 0
        %1126 = vmatpush1.bf16.msra.mxu0 0
        %1127 = vmatprep.subr.bf16.mxu0 0
        %1128 = vmatpush1.bf16.msra.mxu0 0
        %1129 = vmatprep.subr.bf16.mxu0 0
        %1130 = vmatpush1.bf16.msra.mxu0 0
        %1131 = vmatprep.subr.bf16.mxu0 0
        %1132 = vmatpush1.bf16.msra.mxu0 0
        %1133 = vmatprep.mubr.bf16.mxu0 0
        %1134 = vmatmul.mubr.bf16.gmra.mrb[0].mxu0 %v1099
        %v1135 = vpop.f32.mrb[0].mxu0
        %v1136 = vadd.f32 %v732, %v1135
        %v1137 = vpop.f32.mrb[0].mxu0
        %v1138 = vpop.f32.mrb[0].mxu0
        %v1139 = vadd.f32 %v735, %v1138
        %v1140 = vpop.f32.mrb[0].mxu0
        %1141 = vdwg.mxu0
        %v1144 = vunpack.c.l.b16 %v355
        %v1145 = vunpack.c.l.b16 %v356
        %v1146 = vpack.c.b16 %v1145, %v1144
        %v1148 = vsel %vm418, %v1146, 0
        %1150 = vmatprep.subr.bf16.mxu0 0
        %1151 = vmatpush1.bf16.msra.mxu0 %v747
        %1152 = vmatprep.subr.bf16.mxu0 0
        %1153 = vmatpush1.bf16.msra.mxu0 0
        %1154 = vmatprep.subr.bf16.mxu0 0
        %1155 = vmatpush1.bf16.msra.mxu0 0
        %1156 = vmatprep.subr.bf16.mxu0 0
        %1157 = vmatpush1.bf16.msra.mxu0 0
        %1158 = vmatprep.subr.bf16.mxu0 0
        %1159 = vmatpush1.bf16.msra.mxu0 0
        %1160 = vmatprep.subr.bf16.mxu0 0
        %1161 = vmatpush1.bf16.msra.mxu0 0
        %1162 = vmatprep.subr.bf16.mxu0 0
        %1163 = vmatpush1.bf16.msra.mxu0 0
        %1164 = vmatprep.subr.bf16.mxu0 0
        %1165 = vmatpush1.bf16.msra.mxu0 0
        %1166 = vmatprep.subr.bf16.mxu0 0
        %1167 = vmatpush1.bf16.msra.mxu0 0
        %1168 = vmatprep.subr.bf16.mxu0 0
        %1169 = vmatpush1.bf16.msra.mxu0 0
        %1170 = vmatprep.subr.bf16.mxu0 0
        %1171 = vmatpush1.bf16.msra.mxu0 0
        %1172 = vmatprep.subr.bf16.mxu0 0
        %1173 = vmatpush1.bf16.msra.mxu0 0
        %1174 = vmatprep.subr.bf16.mxu0 0
        %1175 = vmatpush1.bf16.msra.mxu0 0
        %1176 = vmatprep.subr.bf16.mxu0 0
        %1177 = vmatpush1.bf16.msra.mxu0 0
        %1178 = vmatprep.subr.bf16.mxu0 0
        %1179 = vmatpush1.bf16.msra.mxu0 0
        %1180 = vmatprep.subr.bf16.mxu0 0
        %1181 = vmatpush1.bf16.msra.mxu0 0
        %1182 = vmatprep.mubr.bf16.mxu0 0
        %1183 = vmatmul.mubr.bf16.gmra.mrb[0].mxu0 %v1148
        %v1184 = vpop.f32.mrb[0].mxu0
        %v1185 = vadd.f32 %v787, %v1184
        %v1186 = vpop.f32.mrb[0].mxu0
        %v1187 = vpop.f32.mrb[0].mxu0
        %v1188 = vadd.f32 %v790, %v1187
        %v1189 = vpop.f32.mrb[0].mxu0
        %1190 = vdwg.mxu0
        %v1193 = vunpack.c.l.b16 %v357
        %v1194 = vunpack.c.l.b16 %v358
        %v1195 = vpack.c.b16 %v1194, %v1193
        %v1197 = vsel %vm418, %v1195, 0
        %1199 = vmatprep.subr.bf16.mxu0 0
        %1200 = vmatpush1.bf16.msra.mxu0 %v802
        %1201 = vmatprep.subr.bf16.mxu0 0
        %1202 = vmatpush1.bf16.msra.mxu0 0
        %1203 = vmatprep.subr.bf16.mxu0 0
        %1204 = vmatpush1.bf16.msra.mxu0 0
        %1205 = vmatprep.subr.bf16.mxu0 0
        %1206 = vmatpush1.bf16.msra.mxu0 0
        %1207 = vmatprep.subr.bf16.mxu0 0
        %1208 = vmatpush1.bf16.msra.mxu0 0
        %1209 = vmatprep.subr.bf16.mxu0 0
        %1210 = vmatpush1.bf16.msra.mxu0 0
        %1211 = vmatprep.subr.bf16.mxu0 0
        %1212 = vmatpush1.bf16.msra.mxu0 0
        %1213 = vmatprep.subr.bf16.mxu0 0
        %1214 = vmatpush1.bf16.msra.mxu0 0
        %1215 = vmatprep.subr.bf16.mxu0 0
        %1216 = vmatpush1.bf16.msra.mxu0 0
        %1217 = vmatprep.subr.bf16.mxu0 0
        %1218 = vmatpush1.bf16.msra.mxu0 0
        %1219 = vmatprep.subr.bf16.mxu0 0
        %1220 = vmatpush1.bf16.msra.mxu0 0
        %1221 = vmatprep.subr.bf16.mxu0 0
        %1222 = vmatpush1.bf16.msra.mxu0 0
        %1223 = vmatprep.subr.bf16.mxu0 0
        %1224 = vmatpush1.bf16.msra.mxu0 0
        %1225 = vmatprep.subr.bf16.mxu0 0
        %1226 = vmatpush1.bf16.msra.mxu0 0
        %1227 = vmatprep.subr.bf16.mxu0 0
        %1228 = vmatpush1.bf16.msra.mxu0 0
        %1229 = vmatprep.subr.bf16.mxu0 0
        %1230 = vmatpush1.bf16.msra.mxu0 0
        %1231 = vmatprep.mubr.bf16.mxu0 0
        %1232 = vmatmul.mubr.bf16.gmra.mrb[0].mxu0 %v1197
        %v1233 = vpop.f32.mrb[0].mxu0
        %v1234 = vadd.f32 %v842, %v1233
        %v1235 = vpop.f32.mrb[0].mxu0
        %v1236 = vpop.f32.mrb[0].mxu0
        %v1237 = vadd.f32 %v845, %v1236
        %v1238 = vpop.f32.mrb[0].mxu0
        %1239 = vdwg.mxu0
        %v1242 = vunpack.c.l.b16 %v391
        %v1243 = vunpack.c.l.b16 %v392
        %v1244 = vpack.c.b16 %v1243, %v1242
        %1246 = vmatprep.subr.bf16.mxu0 0
        %1247 = vmatpush1.bf16.msra.mxu0 %v1244
        %1248 = vmatprep.subr.bf16.mxu0 0
        %1249 = vmatpush1.bf16.msra.mxu0 0
        %1250 = vmatprep.subr.bf16.mxu0 0
        %1251 = vmatpush1.bf16.msra.mxu0 0
        %1252 = vmatprep.subr.bf16.mxu0 0
        %1253 = vmatpush1.bf16.msra.mxu0 0
        %1254 = vmatprep.subr.bf16.mxu0 0
        %1255 = vmatpush1.bf16.msra.mxu0 0
        %1256 = vmatprep.subr.bf16.mxu0 0
        %1257 = vmatpush1.bf16.msra.mxu0 0
        %1258 = vmatprep.subr.bf16.mxu0 0
        %1259 = vmatpush1.bf16.msra.mxu0 0
        %1260 = vmatprep.subr.bf16.mxu0 0
        %1261 = vmatpush1.bf16.msra.mxu0 0
        %1262 = vmatprep.subr.bf16.mxu0 0
        %1263 = vmatpush1.bf16.msra.mxu0 0
        %1264 = vmatprep.subr.bf16.mxu0 0
        %1265 = vmatpush1.bf16.msra.mxu0 0
        %1266 = vmatprep.subr.bf16.mxu0 0
        %1267 = vmatpush1.bf16.msra.mxu0 0
        %1268 = vmatprep.subr.bf16.mxu0 0
        %1269 = vmatpush1.bf16.msra.mxu0 0
        %1270 = vmatprep.subr.bf16.mxu0 0
        %1271 = vmatpush1.bf16.msra.mxu0 0
        %1272 = vmatprep.subr.bf16.mxu0 0
        %1273 = vmatpush1.bf16.msra.mxu0 0
        %1274 = vmatprep.subr.bf16.mxu0 0
        %1275 = vmatpush1.bf16.msra.mxu0 0
        %1276 = vmatprep.subr.bf16.mxu0 0
        %1277 = vmatpush1.bf16.msra.mxu0 0
        %1278 = vmatprep.mubr.bf16.mxu0 0
        %1279 = vmatmul.mubr.bf16.gmra.mrb[0].mxu0 %v854
        %v1280 = vpop.f32.mrb[0].mxu0
        %v1281 = vadd.f32 0.0, %v1280
        %v1282 = vpop.f32.mrb[0].mxu0
        %v1283 = vpop.f32.mrb[0].mxu0
        %v1284 = vadd.f32 0.0, %v1283
        %v1285 = vpop.f32.mrb[0].mxu0
        %1286 = vdwg.mxu0
        %v1289 = vunpack.c.l.b16 %v393
        %v1290 = vunpack.c.l.b16 %v394
        %v1291 = vpack.c.b16 %v1290, %v1289
        %1293 = vmatprep.subr.bf16.mxu0 0
        %1294 = vmatpush1.bf16.msra.mxu0 %v1291
        %1295 = vmatprep.subr.bf16.mxu0 0
        %1296 = vmatpush1.bf16.msra.mxu0 0
        %1297 = vmatprep.subr.bf16.mxu0 0
        %1298 = vmatpush1.bf16.msra.mxu0 0
        %1299 = vmatprep.subr.bf16.mxu0 0
        %1300 = vmatpush1.bf16.msra.mxu0 0
        %1301 = vmatprep.subr.bf16.mxu0 0
        %1302 = vmatpush1.bf16.msra.mxu0 0
        %1303 = vmatprep.subr.bf16.mxu0 0
        %1304 = vmatpush1.bf16.msra.mxu0 0
        %1305 = vmatprep.subr.bf16.mxu0 0
        %1306 = vmatpush1.bf16.msra.mxu0 0
        %1307 = vmatprep.subr.bf16.mxu0 0
        %1308 = vmatpush1.bf16.msra.mxu0 0
        %1309 = vmatprep.subr.bf16.mxu0 0
        %1310 = vmatpush1.bf16.msra.mxu0 0
        %1311 = vmatprep.subr.bf16.mxu0 0
        %1312 = vmatpush1.bf16.msra.mxu0 0
        %1313 = vmatprep.subr.bf16.mxu0 0
        %1314 = vmatpush1.bf16.msra.mxu0 0
        %1315 = vmatprep.subr.bf16.mxu0 0
        %1316 = vmatpush1.bf16.msra.mxu0 0
        %1317 = vmatprep.subr.bf16.mxu0 0
        %1318 = vmatpush1.bf16.msra.mxu0 0
        %1319 = vmatprep.subr.bf16.mxu0 0
        %1320 = vmatpush1.bf16.msra.mxu0 0
        %1321 = vmatprep.subr.bf16.mxu0 0
        %1322 = vmatpush1.bf16.msra.mxu0 0
        %1323 = vmatprep.subr.bf16.mxu0 0
        %1324 = vmatpush1.bf16.msra.mxu0 0
        %1325 = vmatprep.mubr.bf16.mxu0 0
        %1326 = vmatmul.mubr.bf16.gmra.mrb[0].mxu0 %v903
        %v1327 = vpop.f32.mrb[0].mxu0
        %v1328 = vadd.f32 0.0, %v1327
        %v1329 = vpop.f32.mrb[0].mxu0
        %v1330 = vpop.f32.mrb[0].mxu0
        %v1331 = vadd.f32 0.0, %v1330
        %v1332 = vpop.f32.mrb[0].mxu0
        %1333 = vdwg.mxu0
        %v1336 = vunpack.c.l.b16 %v395
        %v1337 = vunpack.c.l.b16 %v396
        %v1338 = vpack.c.b16 %v1337, %v1336
        %1340 = vmatprep.subr.bf16.mxu0 0
        %1341 = vmatpush1.bf16.msra.mxu0 %v1338
        %1342 = vmatprep.subr.bf16.mxu0 0
        %1343 = vmatpush1.bf16.msra.mxu0 0
        %1344 = vmatprep.subr.bf16.mxu0 0
        %1345 = vmatpush1.bf16.msra.mxu0 0
        %1346 = vmatprep.subr.bf16.mxu0 0
        %1347 = vmatpush1.bf16.msra.mxu0 0
        %1348 = vmatprep.subr.bf16.mxu0 0
        %1349 = vmatpush1.bf16.msra.mxu0 0
        %1350 = vmatprep.subr.bf16.mxu0 0
        %1351 = vmatpush1.bf16.msra.mxu0 0
        %1352 = vmatprep.subr.bf16.mxu0 0
        %1353 = vmatpush1.bf16.msra.mxu0 0
        %1354 = vmatprep.subr.bf16.mxu0 0
        %1355 = vmatpush1.bf16.msra.mxu0 0
        %1356 = vmatprep.subr.bf16.mxu0 0
        %1357 = vmatpush1.bf16.msra.mxu0 0
        %1358 = vmatprep.subr.bf16.mxu0 0
        %1359 = vmatpush1.bf16.msra.mxu0 0
        %1360 = vmatprep.subr.bf16.mxu0 0
        %1361 = vmatpush1.bf16.msra.mxu0 0
        %1362 = vmatprep.subr.bf16.mxu0 0
        %1363 = vmatpush1.bf16.msra.mxu0 0
        %1364 = vmatprep.subr.bf16.mxu0 0
        %1365 = vmatpush1.bf16.msra.mxu0 0
        %1366 = vmatprep.subr.bf16.mxu0 0
        %1367 = vmatpush1.bf16.msra.mxu0 0
        %1368 = vmatprep.subr.bf16.mxu0 0
        %1369 = vmatpush1.bf16.msra.mxu0 0
        %1370 = vmatprep.subr.bf16.mxu0 0
        %1371 = vmatpush1.bf16.msra.mxu0 0
        %1372 = vmatprep.mubr.bf16.mxu0 0
        %1373 = vmatmul.mubr.bf16.gmra.mrb[0].mxu0 %v952
        %v1374 = vpop.f32.mrb[0].mxu0
        %v1375 = vadd.f32 0.0, %v1374
        %v1376 = vpop.f32.mrb[0].mxu0
        %v1377 = vpop.f32.mrb[0].mxu0
        %v1378 = vadd.f32 0.0, %v1377
        %v1379 = vpop.f32.mrb[0].mxu0
        %1380 = vdwg.mxu0
        %v1383 = vunpack.c.l.b16 %v397
        %v1384 = vunpack.c.l.b16 %v398
        %v1385 = vpack.c.b16 %v1384, %v1383
        %1387 = vmatprep.subr.bf16.mxu0 0
        %1388 = vmatpush1.bf16.msra.mxu0 %v1385
        %1389 = vmatprep.subr.bf16.mxu0 0
        %1390 = vmatpush1.bf16.msra.mxu0 0
        %1391 = vmatprep.subr.bf16.mxu0 0
        %1392 = vmatpush1.bf16.msra.mxu0 0
        %1393 = vmatprep.subr.bf16.mxu0 0
        %1394 = vmatpush1.bf16.msra.mxu0 0
        %1395 = vmatprep.subr.bf16.mxu0 0
        %1396 = vmatpush1.bf16.msra.mxu0 0
        %1397 = vmatprep.subr.bf16.mxu0 0
        %1398 = vmatpush1.bf16.msra.mxu0 0
        %1399 = vmatprep.subr.bf16.mxu0 0
        %1400 = vmatpush1.bf16.msra.mxu0 0
        %1401 = vmatprep.subr.bf16.mxu0 0
        %1402 = vmatpush1.bf16.msra.mxu0 0
        %1403 = vmatprep.subr.bf16.mxu0 0
        %1404 = vmatpush1.bf16.msra.mxu0 0
        %1405 = vmatprep.subr.bf16.mxu0 0
        %1406 = vmatpush1.bf16.msra.mxu0 0
        %1407 = vmatprep.subr.bf16.mxu0 0
        %1408 = vmatpush1.bf16.msra.mxu0 0
        %1409 = vmatprep.subr.bf16.mxu0 0
        %1410 = vmatpush1.bf16.msra.mxu0 0
        %1411 = vmatprep.subr.bf16.mxu0 0
        %1412 = vmatpush1.bf16.msra.mxu0 0
        %1413 = vmatprep.subr.bf16.mxu0 0
        %1414 = vmatpush1.bf16.msra.mxu0 0
        %1415 = vmatprep.subr.bf16.mxu0 0
        %1416 = vmatpush1.bf16.msra.mxu0 0
        %1417 = vmatprep.subr.bf16.mxu0 0
        %1418 = vmatpush1.bf16.msra.mxu0 0
        %1419 = vmatprep.mubr.bf16.mxu0 0
        %1420 = vmatmul.mubr.bf16.gmra.mrb[0].mxu0 %v1001
        %v1421 = vpop.f32.mrb[0].mxu0
        %v1422 = vadd.f32 0.0, %v1421
        %v1423 = vpop.f32.mrb[0].mxu0
        %v1424 = vpop.f32.mrb[0].mxu0
        %v1425 = vadd.f32 0.0, %v1424
        %v1426 = vpop.f32.mrb[0].mxu0
        %1427 = vdwg.mxu0
        %v1430 = vunpack.c.l.b16 %v399
        %v1431 = vunpack.c.l.b16 %v400
        %v1432 = vpack.c.b16 %v1431, %v1430
        %1434 = vmatprep.subr.bf16.mxu0 0
        %1435 = vmatpush1.bf16.msra.mxu0 %v1432
        %1436 = vmatprep.subr.bf16.mxu0 0
        %1437 = vmatpush1.bf16.msra.mxu0 0
        %1438 = vmatprep.subr.bf16.mxu0 0
        %1439 = vmatpush1.bf16.msra.mxu0 0
        %1440 = vmatprep.subr.bf16.mxu0 0
        %1441 = vmatpush1.bf16.msra.mxu0 0
        %1442 = vmatprep.subr.bf16.mxu0 0
        %1443 = vmatpush1.bf16.msra.mxu0 0
        %1444 = vmatprep.subr.bf16.mxu0 0
        %1445 = vmatpush1.bf16.msra.mxu0 0
        %1446 = vmatprep.subr.bf16.mxu0 0
        %1447 = vmatpush1.bf16.msra.mxu0 0
        %1448 = vmatprep.subr.bf16.mxu0 0
        %1449 = vmatpush1.bf16.msra.mxu0 0
        %1450 = vmatprep.subr.bf16.mxu0 0
        %1451 = vmatpush1.bf16.msra.mxu0 0
        %1452 = vmatprep.subr.bf16.mxu0 0
        %1453 = vmatpush1.bf16.msra.mxu0 0
        %1454 = vmatprep.subr.bf16.mxu0 0
        %1455 = vmatpush1.bf16.msra.mxu0 0
        %1456 = vmatprep.subr.bf16.mxu0 0
        %1457 = vmatpush1.bf16.msra.mxu0 0
        %1458 = vmatprep.subr.bf16.mxu0 0
        %1459 = vmatpush1.bf16.msra.mxu0 0
        %1460 = vmatprep.subr.bf16.mxu0 0
        %1461 = vmatpush1.bf16.msra.mxu0 0
        %1462 = vmatprep.subr.bf16.mxu0 0
        %1463 = vmatpush1.bf16.msra.mxu0 0
        %1464 = vmatprep.subr.bf16.mxu0 0
        %1465 = vmatpush1.bf16.msra.mxu0 0
        %1466 = vmatprep.mubr.bf16.mxu0 0
        %1467 = vmatmul.mubr.bf16.gmra.mrb[0].mxu0 %v1050
        %v1468 = vpop.f32.mrb[0].mxu0
        %v1469 = vadd.f32 0.0, %v1468
        %v1470 = vpop.f32.mrb[0].mxu0
        %v1471 = vpop.f32.mrb[0].mxu0
        %v1472 = vadd.f32 0.0, %v1471
        %v1473 = vpop.f32.mrb[0].mxu0
        %1474 = vdwg.mxu0
        %v1477 = vunpack.c.l.b16 %v401
        %v1478 = vunpack.c.l.b16 %v402
        %v1479 = vpack.c.b16 %v1478, %v1477
        %1481 = vmatprep.subr.bf16.mxu0 0
        %1482 = vmatpush1.bf16.msra.mxu0 %v1479
        %1483 = vmatprep.subr.bf16.mxu0 0
        %1484 = vmatpush1.bf16.msra.mxu0 0
        %1485 = vmatprep.subr.bf16.mxu0 0
        %1486 = vmatpush1.bf16.msra.mxu0 0
        %1487 = vmatprep.subr.bf16.mxu0 0
        %1488 = vmatpush1.bf16.msra.mxu0 0
        %1489 = vmatprep.subr.bf16.mxu0 0
        %1490 = vmatpush1.bf16.msra.mxu0 0
        %1491 = vmatprep.subr.bf16.mxu0 0
        %1492 = vmatpush1.bf16.msra.mxu0 0
        %1493 = vmatprep.subr.bf16.mxu0 0
        %1494 = vmatpush1.bf16.msra.mxu0 0
        %1495 = vmatprep.subr.bf16.mxu0 0
        %1496 = vmatpush1.bf16.msra.mxu0 0
        %1497 = vmatprep.subr.bf16.mxu0 0
        %1498 = vmatpush1.bf16.msra.mxu0 0
        %1499 = vmatprep.subr.bf16.mxu0 0
        %1500 = vmatpush1.bf16.msra.mxu0 0
        %1501 = vmatprep.subr.bf16.mxu0 0
        %1502 = vmatpush1.bf16.msra.mxu0 0
        %1503 = vmatprep.subr.bf16.mxu0 0
        %1504 = vmatpush1.bf16.msra.mxu0 0
        %1505 = vmatprep.subr.bf16.mxu0 0
        %1506 = vmatpush1.bf16.msra.mxu0 0
        %1507 = vmatprep.subr.bf16.mxu0 0
        %1508 = vmatpush1.bf16.msra.mxu0 0
        %1509 = vmatprep.subr.bf16.mxu0 0
        %1510 = vmatpush1.bf16.msra.mxu0 0
        %1511 = vmatprep.subr.bf16.mxu0 0
        %1512 = vmatpush1.bf16.msra.mxu0 0
        %1513 = vmatprep.mubr.bf16.mxu0 0
        %1514 = vmatmul.mubr.bf16.gmra.mrb[0].mxu0 %v1099
        %v1515 = vpop.f32.mrb[0].mxu0
        %v1516 = vadd.f32 0.0, %v1515
        %v1517 = vpop.f32.mrb[0].mxu0
        %v1518 = vpop.f32.mrb[0].mxu0
        %v1519 = vadd.f32 0.0, %v1518
        %v1520 = vpop.f32.mrb[0].mxu0
        %1521 = vdwg.mxu0
        %v1524 = vunpack.c.l.b16 %v403
        %v1525 = vunpack.c.l.b16 %v404
        %v1526 = vpack.c.b16 %v1525, %v1524
        %1528 = vmatprep.subr.bf16.mxu0 0
        %1529 = vmatpush1.bf16.msra.mxu0 %v1526
        %1530 = vmatprep.subr.bf16.mxu0 0
        %1531 = vmatpush1.bf16.msra.mxu0 0
        %1532 = vmatprep.subr.bf16.mxu0 0
        %1533 = vmatpush1.bf16.msra.mxu0 0
        %1534 = vmatprep.subr.bf16.mxu0 0
        %1535 = vmatpush1.bf16.msra.mxu0 0
        %1536 = vmatprep.subr.bf16.mxu0 0
        %1537 = vmatpush1.bf16.msra.mxu0 0
        %1538 = vmatprep.subr.bf16.mxu0 0
        %1539 = vmatpush1.bf16.msra.mxu0 0
        %1540 = vmatprep.subr.bf16.mxu0 0
        %1541 = vmatpush1.bf16.msra.mxu0 0
        %1542 = vmatprep.subr.bf16.mxu0 0
        %1543 = vmatpush1.bf16.msra.mxu0 0
        %1544 = vmatprep.subr.bf16.mxu0 0
        %1545 = vmatpush1.bf16.msra.mxu0 0
        %1546 = vmatprep.subr.bf16.mxu0 0
        %1547 = vmatpush1.bf16.msra.mxu0 0
        %1548 = vmatprep.subr.bf16.mxu0 0
        %1549 = vmatpush1.bf16.msra.mxu0 0
        %1550 = vmatprep.subr.bf16.mxu0 0
        %1551 = vmatpush1.bf16.msra.mxu0 0
        %1552 = vmatprep.subr.bf16.mxu0 0
        %1553 = vmatpush1.bf16.msra.mxu0 0
        %1554 = vmatprep.subr.bf16.mxu0 0
        %1555 = vmatpush1.bf16.msra.mxu0 0
        %1556 = vmatprep.subr.bf16.mxu0 0
        %1557 = vmatpush1.bf16.msra.mxu0 0
        %1558 = vmatprep.subr.bf16.mxu0 0
        %1559 = vmatpush1.bf16.msra.mxu0 0
        %1560 = vmatprep.mubr.bf16.mxu0 0
        %1561 = vmatmul.mubr.bf16.gmra.mrb[0].mxu0 %v1148
        %v1562 = vpop.f32.mrb[0].mxu0
        %v1563 = vadd.f32 0.0, %v1562
        %v1564 = vpop.f32.mrb[0].mxu0
        %v1565 = vpop.f32.mrb[0].mxu0
        %v1566 = vadd.f32 0.0, %v1565
        %v1567 = vpop.f32.mrb[0].mxu0
        %1568 = vdwg.mxu0
        %v1571 = vunpack.c.l.b16 %v405
        %v1572 = vunpack.c.l.b16 %v406
        %v1573 = vpack.c.b16 %v1572, %v1571
        %1575 = vmatprep.subr.bf16.mxu0 0
        %1576 = vmatpush1.bf16.msra.mxu0 %v1573
        %1577 = vmatprep.subr.bf16.mxu0 0
        %1578 = vmatpush1.bf16.msra.mxu0 0
        %1579 = vmatprep.subr.bf16.mxu0 0
        %1580 = vmatpush1.bf16.msra.mxu0 0
        %1581 = vmatprep.subr.bf16.mxu0 0
        %1582 = vmatpush1.bf16.msra.mxu0 0
        %1583 = vmatprep.subr.bf16.mxu0 0
        %1584 = vmatpush1.bf16.msra.mxu0 0
        %1585 = vmatprep.subr.bf16.mxu0 0
        %1586 = vmatpush1.bf16.msra.mxu0 0
        %1587 = vmatprep.subr.bf16.mxu0 0
        %1588 = vmatpush1.bf16.msra.mxu0 0
        %1589 = vmatprep.subr.bf16.mxu0 0
        %1590 = vmatpush1.bf16.msra.mxu0 0
        %1591 = vmatprep.subr.bf16.mxu0 0
        %1592 = vmatpush1.bf16.msra.mxu0 0
        %1593 = vmatprep.subr.bf16.mxu0 0
        %1594 = vmatpush1.bf16.msra.mxu0 0
        %1595 = vmatprep.subr.bf16.mxu0 0
        %1596 = vmatpush1.bf16.msra.mxu0 0
        %1597 = vmatprep.subr.bf16.mxu0 0
        %1598 = vmatpush1.bf16.msra.mxu0 0
        %1599 = vmatprep.subr.bf16.mxu0 0
        %1600 = vmatpush1.bf16.msra.mxu0 0
        %1601 = vmatprep.subr.bf16.mxu0 0
        %1602 = vmatpush1.bf16.msra.mxu0 0
        %1603 = vmatprep.subr.bf16.mxu0 0
        %1604 = vmatpush1.bf16.msra.mxu0 0
        %1605 = vmatprep.subr.bf16.mxu0 0
        %1606 = vmatpush1.bf16.msra.mxu0 0
        %1607 = vmatprep.mubr.bf16.mxu0 0
        %1608 = vmatmul.mubr.bf16.gmra.mrb[0].mxu0 %v1197
        %v1609 = vpop.f32.mrb[0].mxu0
        %v1610 = vadd.f32 0.0, %v1609
        %v1611 = vpop.f32.mrb[0].mxu0
        %v1612 = vpop.f32.mrb[0].mxu0
        %v1613 = vadd.f32 0.0, %v1612
        %v1614 = vpop.f32.mrb[0].mxu0
        %1615 = vdwg.mxu0
        %v1616 = vadd.f32 %v891, %v1281
        %v1617 = vadd.f32 %v894, %v1284
        %v1618 = vadd.f32 %v940, %v1328
        %v1619 = vadd.f32 %v943, %v1331
        %v1620 = vadd.f32 %v989, %v1375
        %v1621 = vadd.f32 %v992, %v1378
        %v1622 = vadd.f32 %v1038, %v1422
        %v1623 = vadd.f32 %v1041, %v1425
        %v1624 = vadd.f32 %v1087, %v1469
        %v1625 = vadd.f32 %v1090, %v1472
        %v1626 = vadd.f32 %v1136, %v1516
        %v1627 = vadd.f32 %v1139, %v1519
        %v1628 = vadd.f32 %v1185, %v1563
        %v1629 = vadd.f32 %v1188, %v1566
        %v1630 = vadd.f32 %v1234, %v1610
        %v1631 = vadd.f32 %v1237, %v1613
        %1632 = vst.msk [vmem:[%s336] sm:$0xff] %vm418, %v1616
        %1633 = vst.msk [vmem:[%s336 + $0x8] sm:$0xff] %vm418, %v1617
        %1634 = vst.msk [vmem:[%s336 + $0x10] sm:$0xff] %vm418, %v1618
        %1635 = vst.msk [vmem:[%s336 + $0x18] sm:$0xff] %vm418, %v1619
        %1636 = vst.msk [vmem:[%s336 + $0x20] sm:$0xff] %vm418, %v1620
        %1637 = vst.msk [vmem:[%s336 + $0x28] sm:$0xff] %vm418, %v1621
        %1638 = vst.msk [vmem:[%s336 + $0x30] sm:$0xff] %vm418, %v1622
        %1639 = vst.msk [vmem:[%s336 + $0x38] sm:$0xff] %vm418, %v1623
        %1640 = vst.msk [vmem:[%s336 + $0x40] sm:$0xff] %vm418, %v1624
        %1641 = vst.msk [vmem:[%s336 + $0x48] sm:$0xff] %vm418, %v1625
        %1642 = vst.msk [vmem:[%s336 + $0x50] sm:$0xff] %vm418, %v1626
        %1643 = vst.msk [vmem:[%s336 + $0x58] sm:$0xff] %vm418, %v1627
        %1644 = vst.msk [vmem:[%s336 + $0x60] sm:$0xff] %vm418, %v1628
        %1645 = vst.msk [vmem:[%s336 + $0x68] sm:$0xff] %vm418, %v1629
        %1646 = vst.msk [vmem:[%s336 + $0x70] sm:$0xff] %vm418, %v1630
        %1647 = vst.msk [vmem:[%s336 + $0x78] sm:$0xff] %vm418, %v1631
        %s1648 = sand.u32 %s139, 1
        %s1649 = scalar_lea.sflag [#allocation4], %s1648
        %s1650 = sand.u32 %s139, 1
        %s1651 = smul.addr %s1650, 128
        %s1652 = scalar_lea.vmem [#allocation10], %s1651
        // Predicated region
        $region53: #{tpu_custom_call.1} parent=35 // pred_check
          %p1653 = pneg %p149
        $region54: #{tpu_custom_call.1} parent=35 // pred_check_branch
          %1655 = sbr.rel (%p1653) target = $region56
        $region55: #{tpu_custom_call.1} parent=35 // pred_region
          %s1656 = smul.u32 8, %s27
          %s1658 = ssub.s32 2048, 2048
          %1659 = vsyncadd %s1649, %s1658
          %s1660 = smul.addr %s1656, 2
          %s1661 = smul.addr %s1660, 128
          %s1662 = scalar_lea.hbm %s4, %s1661
          %s1663 = sshll.u32 %s1652, 4
          %s1664 = int_to_ptr.vmem [resolvable:$true] %s1663
          %1669 = dma.vmem_to_hbm [thread:$0]  %s1664, 2048, %s1662, %s1649, 128, 128, 8
        $region56: #{tpu_custom_call.1} parent=35 // pred_fallthru
          _
      $region36: #{tpu_custom_call.1} parent=5 // pred_fallthru
        _
      %p1670 = scmp.le.s32.totalorder 2, %s22
      // Predicated region
      $region57: #{tpu_custom_call.1} parent=5 // pred_check
        %p1671 = pneg %p1670
      $region58: #{tpu_custom_call.1} parent=5 // pred_check_branch
        %1673 = sbr.rel (%p1671) target = $region60
      $region59: #{tpu_custom_call.1} parent=5 // pred_region
        %s1674 = ssub.s32 %s22, 2
        // Predicated region
        $region61: #{tpu_custom_call.1} parent=59 // pred_check
          %p1675 = pneg %p155
        $region62: #{tpu_custom_call.1} parent=59 // pred_check_branch
          %1677 = sbr.rel (%p1675) target = $region64
        $region63: #{tpu_custom_call.1} parent=59 // pred_region
          %s1678 = sand.u32 %s140, 1
          %s1679 = scalar_lea.sflag [#allocation4], %s1678
          %s1680 = sand.u32 %s140, 1
          %s1681 = smul.addr %s1680, 128
          %s1682 = scalar_lea.vmem [#allocation10], %s1681
          %1683 = dma.done %s1679, 2048
        $region64: #{tpu_custom_call.1} parent=59 // pred_fallthru
          _
      $region60: #{tpu_custom_call.1} parent=5 // pred_fallthru
        _
    $region6: #{tpu_custom_call.1} parent=1 // loop_footer
      %s26 = sadd.s32 1, %s22
    $region7: #{tpu_custom_call.1} parent=1 // loop_footer_branch
      %21 = sbr.rel target = $region3
    $region8: #{tpu_custom_call.1} parent=1 // loop_exit
      _
    %1684 = vsyncpa [#allocation3], 1
    %s1685 = scalar_lea.sflag [#allocation3], 1
    %1686 = vsyncpa %s1685, 1
    %1687 = vsyncpa [#allocation6], 1
    %s1688 = scalar_lea.sflag [#allocation6], 1
    %1689 = vsyncpa %s1688, 1
    %1690 = vsyncpa [#allocation9], 1
    %s1691 = scalar_lea.sflag [#allocation9], 1
    %1692 = vsyncpa %s1691, 1
    %1693 = vsyncpa [#allocation4], 1
    %s1694 = scalar_lea.sflag [#allocation4], 1
    %1695 = vsyncpa %s1694, 1

</llo_original>
